<compile_context>
chip_gen: v7x
topology: tpu7x:2x2x1
jax: 0.10.0
libtpu: 0.0.40
codegen_flags: <defaults>
</compile_context>

<pallas_src>
import functools

import jax
import jax.numpy as jnp
import numpy as np
from jax import lax
from jax.experimental import pallas as pl
from jax.experimental.pallas import tpu as pltpu

BN_EPS = 1e-5                      # nn.BatchNorm2d default
_VMEM_LIMIT = 32 * 1024 * 1024     # explicit scoped-VMEM limit (fits all gens)


def _round_up(v, m):
    return ((v + m - 1) // m) * m


def _largest_tile(hw, cap=1 << 16):
    """Largest spatial tile: full H*W if it fits, else a big /128 divisor."""
    if hw <= cap:
        return hw
    best = hw
    for d in range(128, cap + 1, 128):
        if hw % d == 0:
            best = d
    return best


# --------------------------------------------------------------------------- #
# Pallas kernel: fused (1x1 + 3x3) conv in channel-major layout
#                (+ optional fused BN+tanh applied to the loaded input)
#                + per-image BN partial statistics (sum, sum of squares).
# --------------------------------------------------------------------------- #
def _conv_kernel(*refs, W, pad, fuse_bn):
    if fuse_bn:
        x_ref, w_ref, m_ref, sc_ref, sh_ref, y_ref, st_ref, xp_ref = refs
    else:
        x_ref, w_ref, m_ref, y_ref, st_ref, xp_ref = refs

    hw = y_ref.shape[2]           # H*W  (lane axis)
    ci = x_ref.shape[1]           # input channels of this conv
    co = y_ref.shape[1]           # output channels of this conv

    xin = x_ref[0]                                        # (ci, hw)
    if fuse_bn:
        # previous block's BN + tanh, fused so a1 never round-trips to HBM
        act = jnp.tanh(xin.astype(jnp.float32) * sc_ref[...] + sh_ref[...])
    else:
        act = xin.astype(jnp.float32)

    # zero-bordered activation line in VMEM: the H-halo (rows -1 and H) and
    # the +-1 column guards fall into the zero pads -> no HBM pad pass needed.
    xp_ref[:, pl.ds(0, pad)] = jnp.zeros((ci, pad), jnp.bfloat16)
    xp_ref[:, pl.ds(pad + hw, pad)] = jnp.zeros((ci, pad), jnp.bfloat16)
    xp_ref[:, pl.ds(pad, hw)] = act.astype(jnp.bfloat16)

    not_first = m_ref[0:1, :]     # (1, hw): 0 where col == 0   (dj = -1 wrap)
    not_last = m_ref[1:2, :]      # (1, hw): 0 where col == W-1 (dj = +1 wrap)

    acc = jnp.zeros((co, hw), jnp.float32)
    for t in range(9):            # statically unrolled 3x3 taps
        di, dj = divmod(t, 3)
        xs = xp_ref[:, pl.ds(pad + (di - 1) * W + (dj - 1), hw)]  # (ci, hw)
        if dj == 0:
            xs = xs * not_first
        elif dj == 2:
            xs = xs * not_last
        acc = acc + jnp.dot(w_ref[t], xs, preferred_element_type=jnp.float32)

    y_ref[0] = acc.astype(y_ref.dtype)                    # bf16 store
    s = jnp.sum(acc, axis=1, keepdims=True)               # (co, 1)
    ss = jnp.sum(acc * acc, axis=1, keepdims=True)        # (co, 1)
    st_ref[0] = jnp.concatenate([s, ss], axis=1)          # (co, 2)


def _conv_bn_stats(x, wk, masks, W, scale=None, shift=None,
                   out_dtype=jnp.bfloat16):
    """3x3 conv (pad=1, no bias) over a channel-major flattened image.

    x     : (N, Ci, H*W)   f32 input (block 1) or bf16 y_prev (block 2)
    wk    : (9, Co, Ci)    bf16 tap-major combined (1x1+3x3) weights
    masks : (2, H*W)       bf16 column-wrap masks
    scale/shift : (Ci, 1)  f32; if given, the kernel applies
                           tanh(x*scale+shift) first (fused BN+activation).
    Returns y (N, Co, H*W) `out_dtype` and stats (N, Co, 2) f32 [sum, sumsq].
    """
    N, ci, hw = x.shape
    co = wk.shape[1]
    pad = _round_up(W + 2, 128)           # aligned zero borders, >= W+1 guard
    fuse = scale is not None
    kernel = functools.partial(_conv_kernel, W=W, pad=pad, fuse_bn=fuse)

    in_specs = [
        pl.BlockSpec((1, ci, hw), lambda n: (n, 0, 0)),
        pl.BlockSpec((9, co, ci), lambda n: (0, 0, 0)),
        pl.BlockSpec((2, hw), lambda n: (0, 0)),
    ]
    args = [x, wk, masks]
    if fuse:
        in_specs += [pl.BlockSpec((ci, 1), lambda n: (0, 0)),
                     pl.BlockSpec((ci, 1), lambda n: (0, 0))]
        args += [scale, shift]

    bytes_accessed = int(
        x.size * x.dtype.itemsize + wk.size * wk.dtype.itemsize
        + masks.size * masks.dtype.itemsize
        + N * co * hw * jnp.dtype(out_dtype).itemsize + N * co * 2 * 4)

    y, st = pl.pallas_call(
        kernel,
        grid=(N,),
        in_specs=in_specs,
        out_shape=(jax.ShapeDtypeStruct((N, co, hw), out_dtype),
                   jax.ShapeDtypeStruct((N, co, 2), jnp.float32)),
        out_specs=(pl.BlockSpec((1, co, hw), lambda n: (n, 0, 0)),
                   pl.BlockSpec((1, co, 2), lambda n: (n, 0, 0))),
        scratch_shapes=[pltpu.VMEM((ci, 2 * pad + hw), jnp.bfloat16)],
        compiler_params=pltpu.CompilerParams(
            dimension_semantics=("parallel",),
            vmem_limit_bytes=_VMEM_LIMIT),
        cost_estimate=pl.CostEstimate(
            flops=2 * N * hw * 9 * ci * co,
            transcendentals=(N * hw * ci) if fuse else 0,
            bytes_accessed=bytes_accessed),
    )(*args)
    return y, st


# --------------------------------------------------------------------------- #
# Pallas kernel: final pointwise  out = tanh(x + tanh(y2*scale2 + shift2))
# --------------------------------------------------------------------------- #
def _bn2_residual_kernel(x_ref, y_ref, sc_ref, sh_ref, o_ref):
    a = jnp.tanh(y_ref[0].astype(jnp.float32) * sc_ref[...] + sh_ref[...])
    o_ref[0] = jnp.tanh(x_ref[0] + a).astype(o_ref.dtype)


def _bn2_residual_apply(xf, y2, scale, shift):
    N, c, hw = xf.shape
    tm = _largest_tile(hw)
    nm = hw // tm

    tile = lambda n, m: (n, 0, m)
    vec = lambda n, m: (0, 0)
    return pl.pallas_call(
        _bn2_residual_kernel,
        grid=(N, nm),
        in_specs=[pl.BlockSpec((1, c, tm), tile),
                  pl.BlockSpec((1, c, tm), tile),
                  pl.BlockSpec((c, 1), vec),
                  pl.BlockSpec((c, 1), vec)],
        out_shape=jax.ShapeDtypeStruct((N, c, hw), jnp.float32),
        out_specs=pl.BlockSpec((1, c, tm), tile),
        compiler_params=pltpu.CompilerParams(
            dimension_semantics=("parallel", "parallel"),
            vmem_limit_bytes=_VMEM_LIMIT),
        cost_estimate=pl.CostEstimate(
            flops=4 * N * c * hw,
            transcendentals=2 * N * c * hw,
            bytes_accessed=int(xf.size * 4 + y2.size * 2 + N * c * hw * 4)),
    )(xf, y2, scale, shift)


# --------------------------------------------------------------------------- #
# parameter plumbing
# --------------------------------------------------------------------------- #
def _combined_weights(p):
    """Fold each 1x1 conv into the centre tap of its parallel 3x3 conv and
    repack as tap-major (9, Cout, Cin) bf16 (weight-stationary layout)."""
    w1 = p["w331"].at[:, :, 1, 1].add(p["w111"][:, :, 0, 0])   # (Cout,Cin,3,3)
    w2 = p["w332"].at[:, :, 1, 1].add(p["w112"][:, :, 0, 0])   # (Cin,Cout,3,3)
    wk1 = jnp.transpose(w1, (2, 3, 0, 1)).reshape(9, w1.shape[0], w1.shape[1])
    wk2 = jnp.transpose(w2, (2, 3, 0, 1)).reshape(9, w2.shape[0], w2.shape[1])
    return wk1.astype(jnp.bfloat16), wk2.astype(jnp.bfloat16)


def _bn_affine(st, count, gamma, beta):
    """Fold batch statistics + affine BN params into one scale/shift pair."""
    s = jnp.sum(st[:, :, 0], axis=0)
    ss = jnp.sum(st[:, :, 1], axis=0)
    mean = s / count
    var = jnp.maximum(ss / count - mean * mean, 0.0)   # biased, as in BN train
    scale = gamma * lax.rsqrt(var + BN_EPS)
    shift = beta - mean * scale
    return (scale.reshape(-1, 1).astype(jnp.float32),
            shift.reshape(-1, 1).astype(jnp.float32))


# --------------------------------------------------------------------------- #
# full DeNoise forward (channel-major, no layout transposes)
# --------------------------------------------------------------------------- #
def denoise_forward(x_nchw, params):
    x = x_nchw.astype(jnp.float32)
    N, cin, H, W = x.shape
    hw = H * W
    xf = x.reshape(N, cin, hw)                       # lane axis = H*W

    wk1, wk2 = _combined_weights(params)             # biases cancel (batch BN)

    col = np.arange(hw) % W
    masks = jnp.asarray(np.stack([col != 0, col != W - 1], axis=0),
                        dtype=jnp.bfloat16)

    # block 1: (conv1x1 + conv3x3) -> batch-stat BN -> tanh (applied lazily)
    y1, st1 = _conv_bn_stats(xf, wk1, masks, W)
    sc1, sh1 = _bn_affine(st1, N * hw, params["g1"], params["be1"])

    # block 2: BN1+tanh fused into the conv-2 kernel (a1 never hits HBM)
    y2, st2 = _conv_bn_stats(y1, wk2, masks, W, scale=sc1, shift=sh1)
    sc2, sh2 = _bn_affine(st2, N * hw, params["g2"], params["be2"])

    # out = tanh(x + tanh(BN2(y2)))
    out = _bn2_residual_apply(xf, y2, sc2, sh2)
    return out.reshape(N, cin, H, W)


# --------------------------------------------------------------------------- #
# pure-JAX references
# --------------------------------------------------------------------------- #
def _ref_bn(y, g, b):
    mean = jnp.mean(y, axis=(0, 1, 2), keepdims=True)
    var = jnp.mean((y - mean) ** 2, axis=(0, 1, 2), keepdims=True)
    return (y - mean) * lax.rsqrt(var + BN_EPS) * g + b


def reference_forward(x_nchw, p):
    """Faithful f32 reference (separate convs, with biases)."""
    x = jnp.transpose(x_nchw, (0, 2, 3, 1)).astype(jnp.float32)

    def conv(xx, w_oihw, b, pad):
        w = jnp.transpose(w_oihw, (2, 3, 1, 0))
        y = lax.conv_general_dilated(
            xx, w, (1, 1), [(pad, pad), (pad, pad)],
            dimension_numbers=("NHWC", "HWIO", "NHWC"))
        return y + b

    a1 = jnp.tanh(_ref_bn(conv(x, p["w111"], p["b111"], 0)
                          + conv(x, p["w331"], p["b331"], 1),
                          p["g1"], p["be1"]))
    a2 = jnp.tanh(_ref_bn(conv(a1, p["w112"], p["b112"], 0)
                          + conv(a1, p["w332"], p["b332"], 1),
                          p["g2"], p["be2"]))
    return jnp.transpose(jnp.tanh(x + a2), (0, 3, 1, 2))


def reference_forward_bf16(x_nchw, p):
    """Mirrors the kernel's bf16 quantization points (MXU inputs, y1/y2)."""
    x = jnp.transpose(x_nchw, (0, 2, 3, 1)).astype(jnp.float32)

    def conv3_combined(xx, w33, w11):
        w = w33.at[:, :, 1, 1].add(w11[:, :, 0, 0])
        w = jnp.transpose(w, (2, 3, 1, 0))                       # HWIO
        xx_q = xx.astype(jnp.bfloat16).astype(jnp.float32)
        w_q = w.astype(jnp.bfloat16).astype(jnp.float32)
        return lax.conv_general_dilated(
            xx_q, w_q, (1, 1), [(1, 1), (1, 1)],
            dimension_numbers=("NHWC", "HWIO", "NHWC"))

    def bn_tanh(y, g, b):
        mean = jnp.mean(y, axis=(0, 1, 2))
        var = jnp.maximum(jnp.mean(y * y, axis=(0, 1, 2)) - mean * mean, 0.0)
        scale = g * lax.rsqrt(var + BN_EPS)
        shift = b - mean * scale
        yq = y.astype(jnp.bfloat16).astype(jnp.float32)   # kernel stores bf16 y
        return jnp.tanh(yq * scale + shift)

    a1 = bn_tanh(conv3_combined(x, p["w331"], p["w111"]), p["g1"], p["be1"])
    a2 = bn_tanh(conv3_combined(a1, p["w332"], p["w112"]), p["g2"], p["be2"])
    return jnp.transpose(jnp.tanh(x + a2), (0, 3, 1, 2))


# --------------------------------------------------------------------------- #
# parameter construction
# --------------------------------------------------------------------------- #
def init_params(key, in_dim, out_dim):
    ks = jax.random.split(key, 12)

    def u(k, shape, fan_in):
        b = 1.0 / np.sqrt(fan_in)
        return jax.random.uniform(k, shape, jnp.float32, -b, b)

    return {
        "w111": u(ks[0], (out_dim, in_dim, 1, 1), in_dim),
        "b111": u(ks[1], (out_dim,), in_dim),
        "w331": u(ks[2], (out_dim, in_dim, 3, 3), in_dim * 9),
        "b331": u(ks[3], (out_dim,), in_dim * 9),
        "g1": 1.0 + 0.1 * jax.random.normal(ks[4], (out_dim,), jnp.float32),
        "be1": 0.1 * jax.random.normal(ks[5], (out_dim,), jnp.float32),
        "w112": u(ks[6], (in_dim, out_dim, 1, 1), out_dim),
        "b112": u(ks[7], (in_dim,), out_dim),
        "w332": u(ks[8], (in_dim, out_dim, 3, 3), out_dim * 9),
        "b332": u(ks[9], (in_dim,), out_dim * 9),
        "g2": 1.0 + 0.1 * jax.random.normal(ks[10], (in_dim,), jnp.float32),
        "be2": 0.1 * jax.random.normal(ks[11], (in_dim,), jnp.float32),
    }


# --------------------------------------------------------------------------- #
if __name__ == "__main__":
    in_dim, out_dim = 4, 8
    N, H, W = 2, 16, 16

    x = jax.random.normal(jax.random.PRNGKey(0), (N, in_dim, H, W), jnp.float32)
    params = init_params(jax.random.PRNGKey(1), in_dim, out_dim)

    fwd = jax.jit(denoise_forward)
    out = jax.block_until_ready(fwd(x, params))
    assert out.shape == (N, in_dim, H, W), out.shape

    ref_bf = jax.block_until_ready(jax.jit(reference_forward_bf16)(x, params))
    ref_f32 = jax.block_until_ready(jax.jit(reference_forward)(x, params))

    # tight-ish: same bf16 quantization points -> validates conv/masking/BN plumbing
    np.testing.assert_allclose(np.asarray(out), np.asarray(ref_bf),
                               rtol=1e-2, atol=1e-2)
    # loose: against the full-f32 PyTorch-equivalent module (bf16 MXU headroom)
    np.testing.assert_allclose(np.asarray(out), np.asarray(ref_f32),
                               rtol=6e-2, atol=6e-2)

    print("KERNEL_OK")
</pallas_src>

<mosaic_0001>
module attributes {stable_mosaic.version = 11 : i64} {
  func.func @_conv_kernel(%arg0: i32, %arg1: memref<1x4x256xf32, #tpu.memory_space<vmem>>, %arg2: memref<9x8x4xbf16, #tpu.memory_space<vmem>>, %arg3: memref<2x256xbf16, #tpu.memory_space<vmem>>, %arg4: memref<1x8x256xbf16, #tpu.memory_space<vmem>>, %arg5: memref<1x8x2xf32, #tpu.memory_space<vmem>>, %arg6: memref<4x512xbf16, #tpu.memory_space<vmem>>) attributes {dimension_semantics = [#tpu.dimension_semantics<parallel>], iteration_bounds = array<i64: 2>, scalar_prefetch = 0 : i64, scratch_operands = 1 : i64, tpu.core_type = #tpu.core_type<tc>, window_params = [{transform_indices = @transform_0, window_bounds = array<i64: 1, 4, 256>}, {pipeline_mode = #tpu.pipeline_mode<synchronous>, transform_indices = @transform_1, window_bounds = array<i64: 9, 8, 4>}, {pipeline_mode = #tpu.pipeline_mode<synchronous>, transform_indices = @transform_2, window_bounds = array<i64: 2, 256>}, {transform_indices = @transform_3, window_bounds = array<i64: 1, 8, 256>}, {transform_indices = @transform_4, window_bounds = array<i64: 1, 8, 2>}]} {
    %c0 = arith.constant 0 : index
    %c0_0 = arith.constant 0 : index
    %c0_1 = arith.constant 0 : index
    %0 = vector.load %arg1[%c0, %c0_0, %c0_1] : memref<1x4x256xf32, #tpu.memory_space<vmem>>, vector<1x4x256xf32>
    %1 = vector.shape_cast %0 : vector<1x4x256xf32> to vector<4x256xf32>
    %cst = arith.constant 0.000000e+00 : bf16
    %2 = vector.broadcast %cst : bf16 to vector<4x128xbf16>
    %c0_2 = arith.constant 0 : index
    %c0_3 = arith.constant 0 : index
    %3 = vector.load %arg6[%c0_2, %c0_3] : memref<4x512xbf16, #tpu.memory_space<vmem>>, vector<4x128xbf16>
    tpu.vector_store %arg6[%c0_2, %c0_3], %2 {strides = array<i32>} : memref<4x512xbf16, #tpu.memory_space<vmem>>, vector<4x128xbf16>,
    %cst_4 = arith.constant 0.000000e+00 : bf16
    %4 = vector.broadcast %cst_4 : bf16 to vector<4x128xbf16>
    %c0_5 = arith.constant 0 : index
    %c384 = arith.constant 384 : index
    %5 = vector.load %arg6[%c0_5, %c384] : memref<4x512xbf16, #tpu.memory_space<vmem>>, vector<4x128xbf16>
    tpu.vector_store %arg6[%c0_5, %c384], %4 {strides = array<i32>} : memref<4x512xbf16, #tpu.memory_space<vmem>>, vector<4x128xbf16>,
    %6 = arith.truncf %1 : vector<4x256xf32> to vector<4x256xbf16>
    %c0_6 = arith.constant 0 : index
    %c128 = arith.constant 128 : index
    %7 = vector.load %arg6[%c0_6, %c128] : memref<4x512xbf16, #tpu.memory_space<vmem>>, vector<4x256xbf16>
    tpu.vector_store %arg6[%c0_6, %c128], %6 {strides = array<i32>} : memref<4x512xbf16, #tpu.memory_space<vmem>>, vector<4x256xbf16>,
    %c0_7 = arith.constant 0 : index
    %c0_8 = arith.constant 0 : index
    %8 = vector.load %arg3[%c0_7, %c0_8] : memref<2x256xbf16, #tpu.memory_space<vmem>>, vector<1x256xbf16>
    %c1 = arith.constant 1 : index
    %c0_9 = arith.constant 0 : index
    %9 = vector.load %arg3[%c1, %c0_9] : memref<2x256xbf16, #tpu.memory_space<vmem>>, vector<1x256xbf16>
    %cst_10 = arith.constant 0.000000e+00 : f32
    %10 = vector.broadcast %cst_10 : f32 to vector<8x256xf32>
    %c0_11 = arith.constant 0 : index
    %c111 = arith.constant 111 : index
    %11 = vector.load %arg6[%c0_11, %c111] : memref<4x512xbf16, #tpu.memory_space<vmem>>, vector<4x256xbf16>
    %12 = vector.broadcast %8 : vector<1x256xbf16> to vector<4x256xbf16>
    %13 = arith.mulf %11, %12 : vector<4x256xbf16>
    %c0_12 = arith.constant 0 : index
    %c0_13 = arith.constant 0 : index
    %c0_14 = arith.constant 0 : index
    %14 = vector.load %arg2[%c0_12, %c0_13, %c0_14] : memref<9x8x4xbf16, #tpu.memory_space<vmem>>, vector<1x8x4xbf16>
    %15 = vector.shape_cast %14 : vector<1x8x4xbf16> to vector<8x4xbf16>
    %cst_15 = arith.constant dense<0.000000e+00> : vector<8x256xf32>
    %16 = tpu.matmul %15, %13, %cst_15 {dimension_numbers = #tpu.dot_dimension_numbers<[1], [0], [0], [1], [0, 0, 1, 1], [], []>} : vector<8x4xbf16>, vector<4x256xbf16>, vector<8x256xf32> -> vector<8x256xf32>
    %17 = arith.addf %10, %16 : vector<8x256xf32>
    %c0_16 = arith.constant 0 : index
    %c112 = arith.constant 112 : index
    %18 = vector.load %arg6[%c0_16, %c112] : memref<4x512xbf16, #tpu.memory_space<vmem>>, vector<4x256xbf16>
    %c1_17 = arith.constant 1 : index
    %c0_18 = arith.constant 0 : index
    %c0_19 = arith.constant 0 : index
    %19 = vector.load %arg2[%c1_17, %c0_18, %c0_19] : memref<9x8x4xbf16, #tpu.memory_space<vmem>>, vector<1x8x4xbf16>
    %20 = vector.shape_cast %19 : vector<1x8x4xbf16> to vector<8x4xbf16>
    %cst_20 = arith.constant dense<0.000000e+00> : vector<8x256xf32>
    %21 = tpu.matmul %20, %18, %cst_20 {dimension_numbers = #tpu.dot_dimension_numbers<[1], [0], [0], [1], [0, 0, 1, 1], [], []>} : vector<8x4xbf16>, vector<4x256xbf16>, vector<8x256xf32> -> vector<8x256xf32>
    %22 = arith.addf %17, %21 : vector<8x256xf32>
    %c0_21 = arith.constant 0 : index
    %c113 = arith.constant 113 : index
    %23 = vector.load %arg6[%c0_21, %c113] : memref<4x512xbf16, #tpu.memory_space<vmem>>, vector<4x256xbf16>
    %24 = vector.broadcast %9 : vector<1x256xbf16> to vector<4x256xbf16>
    %25 = arith.mulf %23, %24 : vector<4x256xbf16>
    %c2 = arith.constant 2 : index
    %c0_22 = arith.constant 0 : index
    %c0_23 = arith.constant 0 : index
    %26 = vector.load %arg2[%c2, %c0_22, %c0_23] : memref<9x8x4xbf16, #tpu.memory_space<vmem>>, vector<1x8x4xbf16>
    %27 = vector.shape_cast %26 : vector<1x8x4xbf16> to vector<8x4xbf16>
    %cst_24 = arith.constant dense<0.000000e+00> : vector<8x256xf32>
    %28 = tpu.matmul %27, %25, %cst_24 {dimension_numbers = #tpu.dot_dimension_numbers<[1], [0], [0], [1], [0, 0, 1, 1], [], []>} : vector<8x4xbf16>, vector<4x256xbf16>, vector<8x256xf32> -> vector<8x256xf32>
    %29 = arith.addf %22, %28 : vector<8x256xf32>
    %c0_25 = arith.constant 0 : index
    %c127 = arith.constant 127 : index
    %30 = vector.load %arg6[%c0_25, %c127] : memref<4x512xbf16, #tpu.memory_space<vmem>>, vector<4x256xbf16>
    %31 = vector.broadcast %8 : vector<1x256xbf16> to vector<4x256xbf16>
    %32 = arith.mulf %30, %31 : vector<4x256xbf16>
    %c3 = arith.constant 3 : index
    %c0_26 = arith.constant 0 : index
    %c0_27 = arith.constant 0 : index
    %33 = vector.load %arg2[%c3, %c0_26, %c0_27] : memref<9x8x4xbf16, #tpu.memory_space<vmem>>, vector<1x8x4xbf16>
    %34 = vector.shape_cast %33 : vector<1x8x4xbf16> to vector<8x4xbf16>
    %cst_28 = arith.constant dense<0.000000e+00> : vector<8x256xf32>
    %35 = tpu.matmul %34, %32, %cst_28 {dimension_numbers = #tpu.dot_dimension_numbers<[1], [0], [0], [1], [0, 0, 1, 1], [], []>} : vector<8x4xbf16>, vector<4x256xbf16>, vector<8x256xf32> -> vector<8x256xf32>
    %36 = arith.addf %29, %35 : vector<8x256xf32>
    %c0_29 = arith.constant 0 : index
    %c128_30 = arith.constant 128 : index
    %37 = vector.load %arg6[%c0_29, %c128_30] : memref<4x512xbf16, #tpu.memory_space<vmem>>, vector<4x256xbf16>
    %c4 = arith.constant 4 : index
    %c0_31 = arith.constant 0 : index
    %c0_32 = arith.constant 0 : index
    %38 = vector.load %arg2[%c4, %c0_31, %c0_32] : memref<9x8x4xbf16, #tpu.memory_space<vmem>>, vector<1x8x4xbf16>
    %39 = vector.shape_cast %38 : vector<1x8x4xbf16> to vector<8x4xbf16>
    %cst_33 = arith.constant dense<0.000000e+00> : vector<8x256xf32>
    %40 = tpu.matmul %39, %37, %cst_33 {dimension_numbers = #tpu.dot_dimension_numbers<[1], [0], [0], [1], [0, 0, 1, 1], [], []>} : vector<8x4xbf16>, vector<4x256xbf16>, vector<8x256xf32> -> vector<8x256xf32>
    %41 = arith.addf %36, %40 : vector<8x256xf32>
    %c0_34 = arith.constant 0 : index
    %c129 = arith.constant 129 : index
    %42 = vector.load %arg6[%c0_34, %c129] : memref<4x512xbf16, #tpu.memory_space<vmem>>, vector<4x256xbf16>
    %43 = vector.broadcast %9 : vector<1x256xbf16> to vector<4x256xbf16>
    %44 = arith.mulf %42, %43 : vector<4x256xbf16>
    %c5 = arith.constant 5 : index
    %c0_35 = arith.constant 0 : index
    %c0_36 = arith.constant 0 : index
    %45 = vector.load %arg2[%c5, %c0_35, %c0_36] : memref<9x8x4xbf16, #tpu.memory_space<vmem>>, vector<1x8x4xbf16>
    %46 = vector.shape_cast %45 : vector<1x8x4xbf16> to vector<8x4xbf16>
    %cst_37 = arith.constant dense<0.000000e+00> : vector<8x256xf32>
    %47 = tpu.matmul %46, %44, %cst_37 {dimension_numbers = #tpu.dot_dimension_numbers<[1], [0], [0], [1], [0, 0, 1, 1], [], []>} : vector<8x4xbf16>, vector<4x256xbf16>, vector<8x256xf32> -> vector<8x256xf32>
    %48 = arith.addf %41, %47 : vector<8x256xf32>
    %c0_38 = arith.constant 0 : index
    %c143 = arith.constant 143 : index
    %49 = vector.load %arg6[%c0_38, %c143] : memref<4x512xbf16, #tpu.memory_space<vmem>>, vector<4x256xbf16>
    %50 = vector.broadcast %8 : vector<1x256xbf16> to vector<4x256xbf16>
    %51 = arith.mulf %49, %50 : vector<4x256xbf16>
    %c6 = arith.constant 6 : index
    %c0_39 = arith.constant 0 : index
    %c0_40 = arith.constant 0 : index
    %52 = vector.load %arg2[%c6, %c0_39, %c0_40] : memref<9x8x4xbf16, #tpu.memory_space<vmem>>, vector<1x8x4xbf16>
    %53 = vector.shape_cast %52 : vector<1x8x4xbf16> to vector<8x4xbf16>
    %cst_41 = arith.constant dense<0.000000e+00> : vector<8x256xf32>
    %54 = tpu.matmul %53, %51, %cst_41 {dimension_numbers = #tpu.dot_dimension_numbers<[1], [0], [0], [1], [0, 0, 1, 1], [], []>} : vector<8x4xbf16>, vector<4x256xbf16>, vector<8x256xf32> -> vector<8x256xf32>
    %55 = arith.addf %48, %54 : vector<8x256xf32>
    %c0_42 = arith.constant 0 : index
    %c144 = arith.constant 144 : index
    %56 = vector.load %arg6[%c0_42, %c144] : memref<4x512xbf16, #tpu.memory_space<vmem>>, vector<4x256xbf16>
    %c7 = arith.constant 7 : index
    %c0_43 = arith.constant 0 : index
    %c0_44 = arith.constant 0 : index
    %57 = vector.load %arg2[%c7, %c0_43, %c0_44] : memref<9x8x4xbf16, #tpu.memory_space<vmem>>, vector<1x8x4xbf16>
    %58 = vector.shape_cast %57 : vector<1x8x4xbf16> to vector<8x4xbf16>
    %cst_45 = arith.constant dense<0.000000e+00> : vector<8x256xf32>
    %59 = tpu.matmul %58, %56, %cst_45 {dimension_numbers = #tpu.dot_dimension_numbers<[1], [0], [0], [1], [0, 0, 1, 1], [], []>} : vector<8x4xbf16>, vector<4x256xbf16>, vector<8x256xf32> -> vector<8x256xf32>
    %60 = arith.addf %55, %59 : vector<8x256xf32>
    %c0_46 = arith.constant 0 : index
    %c145 = arith.constant 145 : index
    %61 = vector.load %arg6[%c0_46, %c145] : memref<4x512xbf16, #tpu.memory_space<vmem>>, vector<4x256xbf16>
    %62 = vector.broadcast %9 : vector<1x256xbf16> to vector<4x256xbf16>
    %63 = arith.mulf %61, %62 : vector<4x256xbf16>
    %c8 = arith.constant 8 : index
    %c0_47 = arith.constant 0 : index
    %c0_48 = arith.constant 0 : index
    %64 = vector.load %arg2[%c8, %c0_47, %c0_48] : memref<9x8x4xbf16, #tpu.memory_space<vmem>>, vector<1x8x4xbf16>
    %65 = vector.shape_cast %64 : vector<1x8x4xbf16> to vector<8x4xbf16>
    %cst_49 = arith.constant dense<0.000000e+00> : vector<8x256xf32>
    %66 = tpu.matmul %65, %63, %cst_49 {dimension_numbers = #tpu.dot_dimension_numbers<[1], [0], [0], [1], [0, 0, 1, 1], [], []>} : vector<8x4xbf16>, vector<4x256xbf16>, vector<8x256xf32> -> vector<8x256xf32>
    %67 = arith.addf %60, %66 : vector<8x256xf32>
    %68 = arith.truncf %67 : vector<8x256xf32> to vector<8x256xbf16>
    %c0_50 = arith.constant 0 : index
    %c0_51 = arith.constant 0 : index
    %c0_52 = arith.constant 0 : index
    %69 = vector.load %arg4[%c0_50, %c0_51, %c0_52] : memref<1x8x256xbf16, #tpu.memory_space<vmem>>, vector<1x8x256xbf16>
    %70 = vector.shape_cast %69 : vector<1x8x256xbf16> to vector<8x256xbf16>
    %71 = vector.shape_cast %68 : vector<8x256xbf16> to vector<1x8x256xbf16>
    tpu.vector_store %arg4[%c0_50, %c0_51, %c0_52], %71 {strides = array<i32>} : memref<1x8x256xbf16, #tpu.memory_space<vmem>>, vector<1x8x256xbf16>,
    %cst_53 = arith.constant dense<0.000000e+00> : vector<8xf32>
    %72 = vector.multi_reduction <add>, %67, %cst_53 [1] : vector<8x256xf32> to vector<8xf32>
    %73 = vector.shape_cast %72 : vector<8xf32> to vector<8x1xf32>
    %74 = arith.mulf %67, %67 : vector<8x256xf32>
    %cst_54 = arith.constant dense<0.000000e+00> : vector<8xf32>
    %75 = vector.multi_reduction <add>, %74, %cst_54 [1] : vector<8x256xf32> to vector<8xf32>
    %76 = vector.shape_cast %75 : vector<8xf32> to vector<8x1xf32>
    %77 = tpu.concatenate %73, %76 in 1 : vector<8x1xf32>, vector<8x1xf32> -> vector<8x2xf32>
    %c0_55 = arith.constant 0 : index
    %c0_56 = arith.constant 0 : index
    %c0_57 = arith.constant 0 : index
    %78 = vector.load %arg5[%c0_55, %c0_56, %c0_57] : memref<1x8x2xf32, #tpu.memory_space<vmem>>, vector<1x8x2xf32>
    %79 = vector.shape_cast %78 : vector<1x8x2xf32> to vector<8x2xf32>
    %80 = vector.shape_cast %77 : vector<8x2xf32> to vector<1x8x2xf32>
    tpu.vector_store %arg5[%c0_55, %c0_56, %c0_57], %80 {strides = array<i32>} : memref<1x8x2xf32, #tpu.memory_space<vmem>>, vector<1x8x2xf32>,
    return
  }
  func.func @transform_0(%arg0: i32) -> (i32, i32, i32) {
    %c0_i32 = arith.constant 0 : i32
    %c0_i32_0 = arith.constant 0 : i32
    %c0_i32_1 = arith.constant 0 : i32
    return %arg0, %c0_i32, %c0_i32_0 : i32, i32, i32
  }
  func.func @transform_1(%arg0: i32) -> (i32, i32, i32) {
    %c0_i32 = arith.constant 0 : i32
    %c0_i32_0 = arith.constant 0 : i32
    %c0_i32_1 = arith.constant 0 : i32
    %c0_i32_2 = arith.constant 0 : i32
    return %c0_i32, %c0_i32_0, %c0_i32_1 : i32, i32, i32
  }
  func.func @transform_2(%arg0: i32) -> (i32, i32) {
    %c0_i32 = arith.constant 0 : i32
    %c0_i32_0 = arith.constant 0 : i32
    %c0_i32_1 = arith.constant 0 : i32
    return %c0_i32, %c0_i32_0 : i32, i32
  }
  func.func @transform_3(%arg0: i32) -> (i32, i32, i32) {
    %c0_i32 = arith.constant 0 : i32
    %c0_i32_0 = arith.constant 0 : i32
    %c0_i32_1 = arith.constant 0 : i32
    return %arg0, %c0_i32, %c0_i32_0 : i32, i32, i32
  }
  func.func @transform_4(%arg0: i32) -> (i32, i32, i32) {
    %c0_i32 = arith.constant 0 : i32
    %c0_i32_0 = arith.constant 0 : i32
    %c0_i32_1 = arith.constant 0 : i32
    return %arg0, %c0_i32, %c0_i32_0 : i32, i32, i32
  }
}

module attributes {stable_mosaic.version = 11 : i64} {
  func.func @_conv_kernel(%arg0: i32, %arg1: memref<1x8x256xbf16, #tpu.memory_space<vmem>>, %arg2: memref<9x4x8xbf16, #tpu.memory_space<vmem>>, %arg3: memref<2x256xbf16, #tpu.memory_space<vmem>>, %arg4: memref<8x1xf32, #tpu.memory_space<vmem>>, %arg5: memref<8x1xf32, #tpu.memory_space<vmem>>, %arg6: memref<1x4x256xbf16, #tpu.memory_space<vmem>>, %arg7: memref<1x4x2xf32, #tpu.memory_space<vmem>>, %arg8: memref<8x512xbf16, #tpu.memory_space<vmem>>) attributes {dimension_semantics = [#tpu.dimension_semantics<parallel>], iteration_bounds = array<i64: 2>, scalar_prefetch = 0 : i64, scratch_operands = 1 : i64, tpu.core_type = #tpu.core_type<tc>, window_params = [{transform_indices = @transform_0, window_bounds = array<i64: 1, 8, 256>}, {pipeline_mode = #tpu.pipeline_mode<synchronous>, transform_indices = @transform_1, window_bounds = array<i64: 9, 4, 8>}, {pipeline_mode = #tpu.pipeline_mode<synchronous>, transform_indices = @transform_2, window_bounds = array<i64: 2, 256>}, {pipeline_mode = #tpu.pipeline_mode<synchronous>, transform_indices = @transform_3, window_bounds = array<i64: 8, 1>}, {pipeline_mode = #tpu.pipeline_mode<synchronous>, transform_indices = @transform_4, window_bounds = array<i64: 8, 1>}, {transform_indices = @transform_5, window_bounds = array<i64: 1, 4, 256>}, {transform_indices = @transform_6, window_bounds = array<i64: 1, 4, 2>}]} {
    %c0 = arith.constant 0 : index
    %c0_0 = arith.constant 0 : index
    %c0_1 = arith.constant 0 : index
    %0 = vector.load %arg1[%c0, %c0_0, %c0_1] : memref<1x8x256xbf16, #tpu.memory_space<vmem>>, vector<1x8x256xbf16>
    %1 = vector.shape_cast %0 : vector<1x8x256xbf16> to vector<8x256xbf16>
    %2 = arith.extf %1 : vector<8x256xbf16> to vector<8x256xf32>
    %c0_2 = arith.constant 0 : index
    %c0_3 = arith.constant 0 : index
    %3 = vector.load %arg4[%c0_2, %c0_3] : memref<8x1xf32, #tpu.memory_space<vmem>>, vector<8x1xf32>
    %4 = vector.broadcast %3 : vector<8x1xf32> to vector<8x256xf32>
    %5 = arith.mulf %2, %4 : vector<8x256xf32>
    %c0_4 = arith.constant 0 : index
    %c0_5 = arith.constant 0 : index
    %6 = vector.load %arg5[%c0_4, %c0_5] : memref<8x1xf32, #tpu.memory_space<vmem>>, vector<8x1xf32>
    %7 = vector.broadcast %6 : vector<8x1xf32> to vector<8x256xf32>
    %8 = arith.addf %5, %7 : vector<8x256xf32>
    %9 = math.tanh %8 : vector<8x256xf32>
    %cst = arith.constant 0.000000e+00 : bf16
    %10 = vector.broadcast %cst : bf16 to vector<8x128xbf16>
    %c0_6 = arith.constant 0 : index
    %c0_7 = arith.constant 0 : index
    %11 = vector.load %arg8[%c0_6, %c0_7] : memref<8x512xbf16, #tpu.memory_space<vmem>>, vector<8x128xbf16>
    tpu.vector_store %arg8[%c0_6, %c0_7], %10 {strides = array<i32>} : memref<8x512xbf16, #tpu.memory_space<vmem>>, vector<8x128xbf16>,
    %cst_8 = arith.constant 0.000000e+00 : bf16
    %12 = vector.broadcast %cst_8 : bf16 to vector<8x128xbf16>
    %c0_9 = arith.constant 0 : index
    %c384 = arith.constant 384 : index
    %13 = vector.load %arg8[%c0_9, %c384] : memref<8x512xbf16, #tpu.memory_space<vmem>>, vector<8x128xbf16>
    tpu.vector_store %arg8[%c0_9, %c384], %12 {strides = array<i32>} : memref<8x512xbf16, #tpu.memory_space<vmem>>, vector<8x128xbf16>,
    %14 = arith.truncf %9 : vector<8x256xf32> to vector<8x256xbf16>
    %c0_10 = arith.constant 0 : index
    %c128 = arith.constant 128 : index
    %15 = vector.load %arg8[%c0_10, %c128] : memref<8x512xbf16, #tpu.memory_space<vmem>>, vector<8x256xbf16>
    tpu.vector_store %arg8[%c0_10, %c128], %14 {strides = array<i32>} : memref<8x512xbf16, #tpu.memory_space<vmem>>, vector<8x256xbf16>,
    %c0_11 = arith.constant 0 : index
    %c0_12 = arith.constant 0 : index
    %16 = vector.load %arg3[%c0_11, %c0_12] : memref<2x256xbf16, #tpu.memory_space<vmem>>, vector<1x256xbf16>
    %c1 = arith.constant 1 : index
    %c0_13 = arith.constant 0 : index
    %17 = vector.load %arg3[%c1, %c0_13] : memref<2x256xbf16, #tpu.memory_space<vmem>>, vector<1x256xbf16>
    %cst_14 = arith.constant 0.000000e+00 : f32
    %18 = vector.broadcast %cst_14 : f32 to vector<4x256xf32>
    %c0_15 = arith.constant 0 : index
    %c111 = arith.constant 111 : index
    %19 = vector.load %arg8[%c0_15, %c111] : memref<8x512xbf16, #tpu.memory_space<vmem>>, vector<8x256xbf16>
    %20 = vector.broadcast %16 : vector<1x256xbf16> to vector<8x256xbf16>
    %21 = arith.mulf %19, %20 : vector<8x256xbf16>
    %c0_16 = arith.constant 0 : index
    %c0_17 = arith.constant 0 : index
    %c0_18 = arith.constant 0 : index
    %22 = vector.load %arg2[%c0_16, %c0_17, %c0_18] : memref<9x4x8xbf16, #tpu.memory_space<vmem>>, vector<1x4x8xbf16>
    %23 = vector.shape_cast %22 : vector<1x4x8xbf16> to vector<4x8xbf16>
    %cst_19 = arith.constant dense<0.000000e+00> : vector<4x256xf32>
    %24 = tpu.matmul %23, %21, %cst_19 {dimension_numbers = #tpu.dot_dimension_numbers<[1], [0], [0], [1], [0, 0, 1, 1], [], []>} : vector<4x8xbf16>, vector<8x256xbf16>, vector<4x256xf32> -> vector<4x256xf32>
    %25 = arith.addf %18, %24 : vector<4x256xf32>
    %c0_20 = arith.constant 0 : index
    %c112 = arith.constant 112 : index
    %26 = vector.load %arg8[%c0_20, %c112] : memref<8x512xbf16, #tpu.memory_space<vmem>>, vector<8x256xbf16>
    %c1_21 = arith.constant 1 : index
    %c0_22 = arith.constant 0 : index
    %c0_23 = arith.constant 0 : index
    %27 = vector.load %arg2[%c1_21, %c0_22, %c0_23] : memref<9x4x8xbf16, #tpu.memory_space<vmem>>, vector<1x4x8xbf16>
    %28 = vector.shape_cast %27 : vector<1x4x8xbf16> to vector<4x8xbf16>
    %cst_24 = arith.constant dense<0.000000e+00> : vector<4x256xf32>
    %29 = tpu.matmul %28, %26, %cst_24 {dimension_numbers = #tpu.dot_dimension_numbers<[1], [0], [0], [1], [0, 0, 1, 1], [], []>} : vector<4x8xbf16>, vector<8x256xbf16>, vector<4x256xf32> -> vector<4x256xf32>
    %30 = arith.addf %25, %29 : vector<4x256xf32>
    %c0_25 = arith.constant 0 : index
    %c113 = arith.constant 113 : index
    %31 = vector.load %arg8[%c0_25, %c113] : memref<8x512xbf16, #tpu.memory_space<vmem>>, vector<8x256xbf16>
    %32 = vector.broadcast %17 : vector<1x256xbf16> to vector<8x256xbf16>
    %33 = arith.mulf %31, %32 : vector<8x256xbf16>
    %c2 = arith.constant 2 : index
    %c0_26 = arith.constant 0 : index
    %c0_27 = arith.constant 0 : index
    %34 = vector.load %arg2[%c2, %c0_26, %c0_27] : memref<9x4x8xbf16, #tpu.memory_space<vmem>>, vector<1x4x8xbf16>
    %35 = vector.shape_cast %34 : vector<1x4x8xbf16> to vector<4x8xbf16>
    %cst_28 = arith.constant dense<0.000000e+00> : vector<4x256xf32>
    %36 = tpu.matmul %35, %33, %cst_28 {dimension_numbers = #tpu.dot_dimension_numbers<[1], [0], [0], [1], [0, 0, 1, 1], [], []>} : vector<4x8xbf16>, vector<8x256xbf16>, vector<4x256xf32> -> vector<4x256xf32>
    %37 = arith.addf %30, %36 : vector<4x256xf32>
    %c0_29 = arith.constant 0 : index
    %c127 = arith.constant 127 : index
    %38 = vector.load %arg8[%c0_29, %c127] : memref<8x512xbf16, #tpu.memory_space<vmem>>, vector<8x256xbf16>
    %39 = vector.broadcast %16 : vector<1x256xbf16> to vector<8x256xbf16>
    %40 = arith.mulf %38, %39 : vector<8x256xbf16>
    %c3 = arith.constant 3 : index
    %c0_30 = arith.constant 0 : index
    %c0_31 = arith.constant 0 : index
    %41 = vector.load %arg2[%c3, %c0_30, %c0_31] : memref<9x4x8xbf16, #tpu.memory_space<vmem>>, vector<1x4x8xbf16>
    %42 = vector.shape_cast %41 : vector<1x4x8xbf16> to vector<4x8xbf16>
    %cst_32 = arith.constant dense<0.000000e+00> : vector<4x256xf32>
    %43 = tpu.matmul %42, %40, %cst_32 {dimension_numbers = #tpu.dot_dimension_numbers<[1], [0], [0], [1], [0, 0, 1, 1], [], []>} : vector<4x8xbf16>, vector<8x256xbf16>, vector<4x256xf32> -> vector<4x256xf32>
    %44 = arith.addf %37, %43 : vector<4x256xf32>
    %c0_33 = arith.constant 0 : index
    %c128_34 = arith.constant 128 : index
    %45 = vector.load %arg8[%c0_33, %c128_34] : memref<8x512xbf16, #tpu.memory_space<vmem>>, vector<8x256xbf16>
    %c4 = arith.constant 4 : index
    %c0_35 = arith.constant 0 : index
    %c0_36 = arith.constant 0 : index
    %46 = vector.load %arg2[%c4, %c0_35, %c0_36] : memref<9x4x8xbf16, #tpu.memory_space<vmem>>, vector<1x4x8xbf16>
    %47 = vector.shape_cast %46 : vector<1x4x8xbf16> to vector<4x8xbf16>
    %cst_37 = arith.constant dense<0.000000e+00> : vector<4x256xf32>
    %48 = tpu.matmul %47, %45, %cst_37 {dimension_numbers = #tpu.dot_dimension_numbers<[1], [0], [0], [1], [0, 0, 1, 1], [], []>} : vector<4x8xbf16>, vector<8x256xbf16>, vector<4x256xf32> -> vector<4x256xf32>
    %49 = arith.addf %44, %48 : vector<4x256xf32>
    %c0_38 = arith.constant 0 : index
    %c129 = arith.constant 129 : index
    %50 = vector.load %arg8[%c0_38, %c129] : memref<8x512xbf16, #tpu.memory_space<vmem>>, vector<8x256xbf16>
    %51 = vector.broadcast %17 : vector<1x256xbf16> to vector<8x256xbf16>
    %52 = arith.mulf %50, %51 : vector<8x256xbf16>
    %c5 = arith.constant 5 : index
    %c0_39 = arith.constant 0 : index
    %c0_40 = arith.constant 0 : index
    %53 = vector.load %arg2[%c5, %c0_39, %c0_40] : memref<9x4x8xbf16, #tpu.memory_space<vmem>>, vector<1x4x8xbf16>
    %54 = vector.shape_cast %53 : vector<1x4x8xbf16> to vector<4x8xbf16>
    %cst_41 = arith.constant dense<0.000000e+00> : vector<4x256xf32>
    %55 = tpu.matmul %54, %52, %cst_41 {dimension_numbers = #tpu.dot_dimension_numbers<[1], [0], [0], [1], [0, 0, 1, 1], [], []>} : vector<4x8xbf16>, vector<8x256xbf16>, vector<4x256xf32> -> vector<4x256xf32>
    %56 = arith.addf %49, %55 : vector<4x256xf32>
    %c0_42 = arith.constant 0 : index
    %c143 = arith.constant 143 : index
    %57 = vector.load %arg8[%c0_42, %c143] : memref<8x512xbf16, #tpu.memory_space<vmem>>, vector<8x256xbf16>
    %58 = vector.broadcast %16 : vector<1x256xbf16> to vector<8x256xbf16>
    %59 = arith.mulf %57, %58 : vector<8x256xbf16>
    %c6 = arith.constant 6 : index
    %c0_43 = arith.constant 0 : index
    %c0_44 = arith.constant 0 : index
    %60 = vector.load %arg2[%c6, %c0_43, %c0_44] : memref<9x4x8xbf16, #tpu.memory_space<vmem>>, vector<1x4x8xbf16>
    %61 = vector.shape_cast %60 : vector<1x4x8xbf16> to vector<4x8xbf16>
    %cst_45 = arith.constant dense<0.000000e+00> : vector<4x256xf32>
    %62 = tpu.matmul %61, %59, %cst_45 {dimension_numbers = #tpu.dot_dimension_numbers<[1], [0], [0], [1], [0, 0, 1, 1], [], []>} : vector<4x8xbf16>, vector<8x256xbf16>, vector<4x256xf32> -> vector<4x256xf32>
    %63 = arith.addf %56, %62 : vector<4x256xf32>
    %c0_46 = arith.constant 0 : index
    %c144 = arith.constant 144 : index
    %64 = vector.load %arg8[%c0_46, %c144] : memref<8x512xbf16, #tpu.memory_space<vmem>>, vector<8x256xbf16>
    %c7 = arith.constant 7 : index
    %c0_47 = arith.constant 0 : index
    %c0_48 = arith.constant 0 : index
    %65 = vector.load %arg2[%c7, %c0_47, %c0_48] : memref<9x4x8xbf16, #tpu.memory_space<vmem>>, vector<1x4x8xbf16>
    %66 = vector.shape_cast %65 : vector<1x4x8xbf16> to vector<4x8xbf16>
    %cst_49 = arith.constant dense<0.000000e+00> : vector<4x256xf32>
    %67 = tpu.matmul %66, %64, %cst_49 {dimension_numbers = #tpu.dot_dimension_numbers<[1], [0], [0], [1], [0, 0, 1, 1], [], []>} : vector<4x8xbf16>, vector<8x256xbf16>, vector<4x256xf32> -> vector<4x256xf32>
    %68 = arith.addf %63, %67 : vector<4x256xf32>
    %c0_50 = arith.constant 0 : index
    %c145 = arith.constant 145 : index
    %69 = vector.load %arg8[%c0_50, %c145] : memref<8x512xbf16, #tpu.memory_space<vmem>>, vector<8x256xbf16>
    %70 = vector.broadcast %17 : vector<1x256xbf16> to vector<8x256xbf16>
    %71 = arith.mulf %69, %70 : vector<8x256xbf16>
    %c8 = arith.constant 8 : index
    %c0_51 = arith.constant 0 : index
    %c0_52 = arith.constant 0 : index
    %72 = vector.load %arg2[%c8, %c0_51, %c0_52] : memref<9x4x8xbf16, #tpu.memory_space<vmem>>, vector<1x4x8xbf16>
    %73 = vector.shape_cast %72 : vector<1x4x8xbf16> to vector<4x8xbf16>
    %cst_53 = arith.constant dense<0.000000e+00> : vector<4x256xf32>
    %74 = tpu.matmul %73, %71, %cst_53 {dimension_numbers = #tpu.dot_dimension_numbers<[1], [0], [0], [1], [0, 0, 1, 1], [], []>} : vector<4x8xbf16>, vector<8x256xbf16>, vector<4x256xf32> -> vector<4x256xf32>
    %75 = arith.addf %68, %74 : vector<4x256xf32>
    %76 = arith.truncf %75 : vector<4x256xf32> to vector<4x256xbf16>
    %c0_54 = arith.constant 0 : index
    %c0_55 = arith.constant 0 : index
    %c0_56 = arith.constant 0 : index
    %77 = vector.load %arg6[%c0_54, %c0_55, %c0_56] : memref<1x4x256xbf16, #tpu.memory_space<vmem>>, vector<1x4x256xbf16>
    %78 = vector.shape_cast %77 : vector<1x4x256xbf16> to vector<4x256xbf16>
    %79 = vector.shape_cast %76 : vector<4x256xbf16> to vector<1x4x256xbf16>
    tpu.vector_store %arg6[%c0_54, %c0_55, %c0_56], %79 {strides = array<i32>} : memref<1x4x256xbf16, #tpu.memory_space<vmem>>, vector<1x4x256xbf16>,
    %cst_57 = arith.constant dense<0.000000e+00> : vector<4xf32>
    %80 = vector.multi_reduction <add>, %75, %cst_57 [1] : vector<4x256xf32> to vector<4xf32>
    %81 = vector.shape_cast %80 : vector<4xf32> to vector<4x1xf32>
    %82 = arith.mulf %75, %75 : vector<4x256xf32>
    %cst_58 = arith.constant dense<0.000000e+00> : vector<4xf32>
    %83 = vector.multi_reduction <add>, %82, %cst_58 [1] : vector<4x256xf32> to vector<4xf32>
    %84 = vector.shape_cast %83 : vector<4xf32> to vector<4x1xf32>
    %85 = tpu.concatenate %81, %84 in 1 : vector<4x1xf32>, vector<4x1xf32> -> vector<4x2xf32>
    %c0_59 = arith.constant 0 : index
    %c0_60 = arith.constant 0 : index
    %c0_61 = arith.constant 0 : index
    %86 = vector.load %arg7[%c0_59, %c0_60, %c0_61] : memref<1x4x2xf32, #tpu.memory_space<vmem>>, vector<1x4x2xf32>
    %87 = vector.shape_cast %86 : vector<1x4x2xf32> to vector<4x2xf32>
    %88 = vector.shape_cast %85 : vector<4x2xf32> to vector<1x4x2xf32>
    tpu.vector_store %arg7[%c0_59, %c0_60, %c0_61], %88 {strides = array<i32>} : memref<1x4x2xf32, #tpu.memory_space<vmem>>, vector<1x4x2xf32>,
    return
  }
  func.func @transform_0(%arg0: i32) -> (i32, i32, i32) {
    %c0_i32 = arith.constant 0 : i32
    %c0_i32_0 = arith.constant 0 : i32
    %c0_i32_1 = arith.constant 0 : i32
    return %arg0, %c0_i32, %c0_i32_0 : i32, i32, i32
  }
  func.func @transform_1(%arg0: i32) -> (i32, i32, i32) {
    %c0_i32 = arith.constant 0 : i32
    %c0_i32_0 = arith.constant 0 : i32
    %c0_i32_1 = arith.constant 0 : i32
    %c0_i32_2 = arith.constant 0 : i32
    return %c0_i32, %c0_i32_0, %c0_i32_1 : i32, i32, i32
  }
  func.func @transform_2(%arg0: i32) -> (i32, i32) {
    %c0_i32 = arith.constant 0 : i32
    %c0_i32_0 = arith.constant 0 : i32
    %c0_i32_1 = arith.constant 0 : i32
    return %c0_i32, %c0_i32_0 : i32, i32
  }
  func.func @transform_3(%arg0: i32) -> (i32, i32) {
    %c0_i32 = arith.constant 0 : i32
    %c0_i32_0 = arith.constant 0 : i32
    %c0_i32_1 = arith.constant 0 : i32
    return %c0_i32, %c0_i32_0 : i32, i32
  }
  func.func @transform_4(%arg0: i32) -> (i32, i32) {
    %c0_i32 = arith.constant 0 : i32
    %c0_i32_0 = arith.constant 0 : i32
    %c0_i32_1 = arith.constant 0 : i32
    return %c0_i32, %c0_i32_0 : i32, i32
  }
  func.func @transform_5(%arg0: i32) -> (i32, i32, i32) {
    %c0_i32 = arith.constant 0 : i32
    %c0_i32_0 = arith.constant 0 : i32
    %c0_i32_1 = arith.constant 0 : i32
    return %arg0, %c0_i32, %c0_i32_0 : i32, i32, i32
  }
  func.func @transform_6(%arg0: i32) -> (i32, i32, i32) {
    %c0_i32 = arith.constant 0 : i32
    %c0_i32_0 = arith.constant 0 : i32
    %c0_i32_1 = arith.constant 0 : i32
    return %arg0, %c0_i32, %c0_i32_0 : i32, i32, i32
  }
}

module attributes {stable_mosaic.version = 11 : i64} {
  func.func @_bn2_residual_kernel(%arg0: i32, %arg1: i32, %arg2: memref<1x4x256xf32, #tpu.memory_space<vmem>>, %arg3: memref<1x4x256xbf16, #tpu.memory_space<vmem>>, %arg4: memref<4x1xf32, #tpu.memory_space<vmem>>, %arg5: memref<4x1xf32, #tpu.memory_space<vmem>>, %arg6: memref<1x4x256xf32, #tpu.memory_space<vmem>>) attributes {dimension_semantics = [#tpu.dimension_semantics<parallel>, #tpu.dimension_semantics<parallel>], iteration_bounds = array<i64: 2, 1>, scalar_prefetch = 0 : i64, scratch_operands = 0 : i64, tpu.core_type = #tpu.core_type<tc>, window_params = [{transform_indices = @transform_0, window_bounds = array<i64: 1, 4, 256>}, {transform_indices = @transform_1, window_bounds = array<i64: 1, 4, 256>}, {pipeline_mode = #tpu.pipeline_mode<synchronous>, transform_indices = @transform_2, window_bounds = array<i64: 4, 1>}, {pipeline_mode = #tpu.pipeline_mode<synchronous>, transform_indices = @transform_3, window_bounds = array<i64: 4, 1>}, {transform_indices = @transform_4, window_bounds = array<i64: 1, 4, 256>}]} {
    %c0 = arith.constant 0 : index
    %c0_0 = arith.constant 0 : index
    %c0_1 = arith.constant 0 : index
    %0 = vector.load %arg3[%c0, %c0_0, %c0_1] : memref<1x4x256xbf16, #tpu.memory_space<vmem>>, vector<1x4x256xbf16>
    %1 = vector.shape_cast %0 : vector<1x4x256xbf16> to vector<4x256xbf16>
    %2 = arith.extf %1 : vector<4x256xbf16> to vector<4x256xf32>
    %c0_2 = arith.constant 0 : index
    %c0_3 = arith.constant 0 : index
    %3 = vector.load %arg4[%c0_2, %c0_3] : memref<4x1xf32, #tpu.memory_space<vmem>>, vector<4x1xf32>
    %4 = vector.broadcast %3 : vector<4x1xf32> to vector<4x256xf32>
    %5 = arith.mulf %2, %4 : vector<4x256xf32>
    %c0_4 = arith.constant 0 : index
    %c0_5 = arith.constant 0 : index
    %6 = vector.load %arg5[%c0_4, %c0_5] : memref<4x1xf32, #tpu.memory_space<vmem>>, vector<4x1xf32>
    %7 = vector.broadcast %6 : vector<4x1xf32> to vector<4x256xf32>
    %8 = arith.addf %5, %7 : vector<4x256xf32>
    %9 = math.tanh %8 : vector<4x256xf32>
    %c0_6 = arith.constant 0 : index
    %c0_7 = arith.constant 0 : index
    %c0_8 = arith.constant 0 : index
    %10 = vector.load %arg2[%c0_6, %c0_7, %c0_8] : memref<1x4x256xf32, #tpu.memory_space<vmem>>, vector<1x4x256xf32>
    %11 = vector.shape_cast %10 : vector<1x4x256xf32> to vector<4x256xf32>
    %12 = arith.addf %11, %9 : vector<4x256xf32>
    %13 = math.tanh %12 : vector<4x256xf32>
    %c0_9 = arith.constant 0 : index
    %c0_10 = arith.constant 0 : index
    %c0_11 = arith.constant 0 : index
    %14 = vector.load %arg6[%c0_9, %c0_10, %c0_11] : memref<1x4x256xf32, #tpu.memory_space<vmem>>, vector<1x4x256xf32>
    %15 = vector.shape_cast %14 : vector<1x4x256xf32> to vector<4x256xf32>
    %16 = vector.shape_cast %13 : vector<4x256xf32> to vector<1x4x256xf32>
    tpu.vector_store %arg6[%c0_9, %c0_10, %c0_11], %16 {strides = array<i32>} : memref<1x4x256xf32, #tpu.memory_space<vmem>>, vector<1x4x256xf32>,
    return
  }
  func.func @transform_0(%arg0: i32, %arg1: i32) -> (i32, i32, i32) {
    %c0_i32 = arith.constant 0 : i32
    %c0_i32_0 = arith.constant 0 : i32
    return %arg0, %c0_i32, %arg1 : i32, i32, i32
  }
  func.func @transform_1(%arg0: i32, %arg1: i32) -> (i32, i32, i32) {
    %c0_i32 = arith.constant 0 : i32
    %c0_i32_0 = arith.constant 0 : i32
    return %arg0, %c0_i32, %arg1 : i32, i32, i32
  }
  func.func @transform_2(%arg0: i32, %arg1: i32) -> (i32, i32) {
    %c0_i32 = arith.constant 0 : i32
    %c0_i32_0 = arith.constant 0 : i32
    %c0_i32_1 = arith.constant 0 : i32
    return %c0_i32, %c0_i32_0 : i32, i32
  }
  func.func @transform_3(%arg0: i32, %arg1: i32) -> (i32, i32) {
    %c0_i32 = arith.constant 0 : i32
    %c0_i32_0 = arith.constant 0 : i32
    %c0_i32_1 = arith.constant 0 : i32
    return %c0_i32, %c0_i32_0 : i32, i32
  }
  func.func @transform_4(%arg0: i32, %arg1: i32) -> (i32, i32, i32) {
    %c0_i32 = arith.constant 0 : i32
    %c0_i32_0 = arith.constant 0 : i32
    return %arg0, %c0_i32, %arg1 : i32, i32, i32
  }
}

</mosaic_0001>

<llo_original>
// kernel: denoise_forward.5
$region0: #{denoise_forward.5}
  #allocation0 [shape = 'u32[]', space=smem, size = 0x4, offset = 0x4, fixed_abs, tag = 'smem constant byte address 0x4 - core index']
  #allocation1 [shape = 'u32[144,128]{1,0:T(1,128)}', space=vmem, size = 0x12000, scoped, tag = 'internal scratch']
  %s0 = inlined_call_operand.vmem [shape: f32[2,4,256], index: 0, kind: input, shape index: {}]
  %s1 = inlined_call_operand.vmem [shape: bf16[2,4,256], index: 1, kind: input, shape index: {}]
  %s2 = inlined_call_operand.vmem [shape: f32[4,1], index: 2, kind: input, shape index: {}]
  %s3 = inlined_call_operand.vmem [shape: f32[4,1], index: 3, kind: input, shape index: {}]
  %s4 = inlined_call_operand.vmem [shape: f32[2,4,256], index: 4, kind: output, shape index: {}]
  %s5 = sld [smem:[#allocation0]]
  $region49: #{denoise_forward.5} parent=0
    _
  %s7 = ssub.s32 1, %s5
  %s8 = scalar_select 0, %s7, %s5
  loop: start=0, step=1, limit=4
  $region2: #{denoise_forward.5} parent=0 // loop_pre_header
    _
  $region3: #{denoise_forward.5} parent=0 // loop_header
    %s10 = sphi 0, %s14
    %p11 = scmp.ge.s32.totalorder %s10, 4
    %s17 = sphi 0, %s29
    %s18 = sphi 0, %s25
    %s19 = sphi 0, %s17
    %s20 = sphi 0, %s18
    %s21 = sphi 0, %s19
    %s22 = sphi 0, %s20
    %s34 = sphi 0, %s36
    %s37 = sphi 0, %s34
    %s38 = sphi 0, %s37
    %s54 = sphi 0, %s38
    %s62 = sphi 0, %s64
    %s65 = sphi 0, %s62
    %s66 = sphi 0, %s65
    %s82 = sphi 0, %s66
    %s86 = sphi 0, %s86
    %s88 = sphi 0, %s86
    %s89 = sphi 0, %s88
    %s103 = sphi 0, %s89
    %s107 = sphi 0, %s107
    %s109 = sphi 0, %s107
    %s110 = sphi 0, %s109
    %s124 = sphi 0, %s110
    %s132 = sphi 0, %s134
    %s135 = sphi 0, %s132
    %s136 = sphi 0, %s135
    %s152 = sphi 0, %s136
  $region4: #{denoise_forward.5} parent=0 // loop_header_branch
    %13 = sbr.rel (%p11) target = $region8
  $region5: #{denoise_forward.5} parent=0 // loop_body
    %s15 = ssub.s32 %s10, 1
    %s16 = ssub.s32 %s10, 2
    %s23 = sadd.s32 1, %s18
    %p24 = scmp.ge.s32.totalorder %s23, 1
    %s25 = scalar_select %p24, 0, %s23
    %s26 = sadd.s32 1, %s17
    %s27 = scalar_select %p24, %s26, %s17
    %p28 = scmp.ge.s32.totalorder %s27, 2
    %s29 = scalar_select %p28, 0, %s27
    %s30 = ssub.s32 %s17, %s29
    %s31 = ssub.s32 %s18, %s25
    %s32 = sor.u32 %s30, %s31
    %p33 = scmp.eq.s32.totalorder %s32, 0
    %s35 = sadd.s32 %s34, 1
    %s36 = scalar_select %p33, %s34, %s35
    %p39 = pneg %p33
    %p40 = scmp.eq.s32.totalorder %s10, 1
    %p41 = por %p39, %p40
    %p42 = scmp.ne.s32.totalorder %s34, %s37
    %p43 = scmp.eq.s32.totalorder %s10, 0
    %p44 = por %p42, %p43
    %p45 = scmp.ne.s32.totalorder %s34, %s37
    %p46 = scmp.eq.s32.totalorder %s15, 1
    %p47 = por %p45, %p46
    %p48 = scmp.ne.s32.totalorder %s37, %s38
    %p49 = scmp.eq.s32.totalorder %s15, 0
    %p50 = por %p48, %p49
    %p51 = scmp.ne.s32.totalorder %s37, %s38
    %p52 = scmp.eq.s32.totalorder %s16, 1
    %p53 = por %p51, %p52
    %p55 = scmp.ne.s32.totalorder %s38, %s54
    %p56 = scmp.eq.s32.totalorder %s16, 0
    %p57 = por %p55, %p56
    %s58 = ssub.s32 %s17, %s29
    %s59 = ssub.s32 %s18, %s25
    %s60 = sor.u32 %s58, %s59
    %p61 = scmp.eq.s32.totalorder %s60, 0
    %s63 = sadd.s32 %s62, 1
    %s64 = scalar_select %p61, %s62, %s63
    %p67 = pneg %p61
    %p68 = scmp.eq.s32.totalorder %s10, 1
    %p69 = por %p67, %p68
    %p70 = scmp.ne.s32.totalorder %s62, %s65
    %p71 = scmp.eq.s32.totalorder %s10, 0
    %p72 = por %p70, %p71
    %p73 = scmp.ne.s32.totalorder %s62, %s65
    %p74 = scmp.eq.s32.totalorder %s15, 1
    %p75 = por %p73, %p74
    %p76 = scmp.ne.s32.totalorder %s65, %s66
    %p77 = scmp.eq.s32.totalorder %s15, 0
    %p78 = por %p76, %p77
    %p79 = scmp.ne.s32.totalorder %s65, %s66
    %p80 = scmp.eq.s32.totalorder %s16, 1
    %p81 = por %p79, %p80
    %p83 = scmp.ne.s32.totalorder %s66, %s82
    %p84 = scmp.eq.s32.totalorder %s16, 0
    %p85 = por %p83, %p84
    %s87 = sadd.s32 %s86, 1
    %p90 = scmp.eq.s32.totalorder %s10, 1
    %p91 = scmp.ne.s32.totalorder %s86, %s88
    %p92 = scmp.eq.s32.totalorder %s10, 0
    %p93 = por %p91, %p92
    %p94 = scmp.ne.s32.totalorder %s86, %s88
    %p95 = scmp.eq.s32.totalorder %s15, 1
    %p96 = por %p94, %p95
    %p97 = scmp.ne.s32.totalorder %s88, %s89
    %p98 = scmp.eq.s32.totalorder %s15, 0
    %p99 = por %p97, %p98
    %p100 = scmp.ne.s32.totalorder %s88, %s89
    %p101 = scmp.eq.s32.totalorder %s16, 1
    %p102 = por %p100, %p101
    %p104 = scmp.ne.s32.totalorder %s89, %s103
    %p105 = scmp.eq.s32.totalorder %s16, 0
    %p106 = por %p104, %p105
    %s108 = sadd.s32 %s107, 1
    %p111 = scmp.eq.s32.totalorder %s10, 1
    %p112 = scmp.ne.s32.totalorder %s107, %s109
    %p113 = scmp.eq.s32.totalorder %s10, 0
    %p114 = por %p112, %p113
    %p115 = scmp.ne.s32.totalorder %s107, %s109
    %p116 = scmp.eq.s32.totalorder %s15, 1
    %p117 = por %p115, %p116
    %p118 = scmp.ne.s32.totalorder %s109, %s110
    %p119 = scmp.eq.s32.totalorder %s15, 0
    %p120 = por %p118, %p119
    %p121 = scmp.ne.s32.totalorder %s109, %s110
    %p122 = scmp.eq.s32.totalorder %s16, 1
    %p123 = por %p121, %p122
    %p125 = scmp.ne.s32.totalorder %s110, %s124
    %p126 = scmp.eq.s32.totalorder %s16, 0
    %p127 = por %p125, %p126
    %s128 = ssub.s32 %s17, %s29
    %s129 = ssub.s32 %s18, %s25
    %s130 = sor.u32 %s128, %s129
    %p131 = scmp.eq.s32.totalorder %s130, 0
    %s133 = sadd.s32 %s132, 1
    %s134 = scalar_select %p131, %s132, %s133
    %p137 = pneg %p131
    %p138 = scmp.eq.s32.totalorder %s10, 1
    %p139 = por %p137, %p138
    %p140 = scmp.ne.s32.totalorder %s132, %s135
    %p141 = scmp.eq.s32.totalorder %s10, 0
    %p142 = por %p140, %p141
    %p143 = scmp.ne.s32.totalorder %s132, %s135
    %p144 = scmp.eq.s32.totalorder %s15, 1
    %p145 = por %p143, %p144
    %p146 = scmp.ne.s32.totalorder %s135, %s136
    %p147 = scmp.eq.s32.totalorder %s15, 0
    %p148 = por %p146, %p147
    %p149 = scmp.ne.s32.totalorder %s135, %s136
    %p150 = scmp.eq.s32.totalorder %s16, 1
    %p151 = por %p149, %p150
    %p153 = scmp.ne.s32.totalorder %s136, %s152
    %p154 = scmp.eq.s32.totalorder %s16, 0
    %p155 = por %p153, %p154
    %p156 = scmp.le.s32.totalorder 1, %s10
    %p157 = scmp.lt.s32.totalorder %s10, 3
    %p158 = pnand %p156, %p157
    %p159 = pneg %p158
    // Predicated region
    $region9: #{denoise_forward.5} parent=5 // pred_check
      _
    $region10: #{denoise_forward.5} parent=5 // pred_check_branch
      %161 = sbr.rel (%p158) target = $region12
    $region11: #{denoise_forward.5} parent=5 // pred_region
      %s162 = ssub.s32 %s10, 1
      // Predicated region
      $region13: #{denoise_forward.5} parent=11 // pred_check
        %p163 = pneg %p99
      $region14: #{denoise_forward.5} parent=11 // pred_check_branch
        %165 = sbr.rel (%p163) target = $region16
      $region15: #{denoise_forward.5} parent=11 // pred_region
        _
      $region16: #{denoise_forward.5} parent=11 // pred_fallthru
        _
      // Predicated region
      $region17: #{denoise_forward.5} parent=11 // pred_check
        %p166 = pneg %p120
      $region18: #{denoise_forward.5} parent=11 // pred_check_branch
        %168 = sbr.rel (%p166) target = $region20
      $region19: #{denoise_forward.5} parent=11 // pred_region
        _
      $region20: #{denoise_forward.5} parent=11 // pred_fallthru
        _
    $region12: #{denoise_forward.5} parent=5 // pred_fallthru
      _
    %p169 = scmp.lt.s32.totalorder %s10, 2
    // Predicated region
    $region21: #{denoise_forward.5} parent=5 // pred_check
      %p170 = pneg %p169
    $region22: #{denoise_forward.5} parent=5 // pred_check_branch
      %172 = sbr.rel (%p170) target = $region24
    $region23: #{denoise_forward.5} parent=5 // pred_region
      // Predicated region
      $region25: #{denoise_forward.5} parent=23 // pred_check
        %p173 = pneg %p44
      $region26: #{denoise_forward.5} parent=23 // pred_check_branch
        %175 = sbr.rel (%p173) target = $region28
      $region27: #{denoise_forward.5} parent=23 // pred_region
        %s176 = smul.u32 2, %s18
        %p177 = scmp.lt.s32.totalorder %s17, 1
        %s178 = scalar_select %p177, %s17, 1
        %p179 = scmp.lt.s32.totalorder %s176, 1
        %s180 = scalar_select %p179, %s176, 1
        %s181 = smul.addr %s178, 2
        %s182 = sadd.s32 %s180, %s181
        %s183 = smul.addr %s182, 4
        %s184 = scalar_lea.vmem %s0, %s183
        %s185 = smul.u32 2, %s18
      $region28: #{denoise_forward.5} parent=23 // pred_fallthru
        _
      // Predicated region
      $region29: #{denoise_forward.5} parent=23 // pred_check
        %p186 = pneg %p72
      $region30: #{denoise_forward.5} parent=23 // pred_check_branch
        %188 = sbr.rel (%p186) target = $region32
      $region31: #{denoise_forward.5} parent=23 // pred_region
        %s189 = smul.u32 2, %s18
        %p190 = scmp.lt.s32.totalorder %s17, 1
        %s191 = scalar_select %p190, %s17, 1
        %p192 = scmp.lt.s32.totalorder %s189, 1
        %s193 = scalar_select %p192, %s189, 1
        %s194 = smul.addr %s191, 2
        %s195 = sadd.s32 %s193, %s194
        %s196 = smul.addr %s195, 2
        %s197 = scalar_lea.vmem %s1, %s196
        %s198 = smul.u32 2, %s18
      $region32: #{denoise_forward.5} parent=23 // pred_fallthru
        _
    $region24: #{denoise_forward.5} parent=5 // pred_fallthru
      _
    %p199 = scmp.le.s32.totalorder 1, %s10
    %p200 = scmp.lt.s32.totalorder %s10, 3
    %p201 = pnand %p199, %p200
    %p202 = pneg %p201
    // Predicated region
    $region33: #{denoise_forward.5} parent=5 // pred_check
      _
    $region34: #{denoise_forward.5} parent=5 // pred_check_branch
      %204 = sbr.rel (%p201) target = $region36
    $region35: #{denoise_forward.5} parent=5 // pred_region
      %s205 = ssub.s32 %s10, 1
      %s206 = smul.u32 2, %s20
      %p207 = scmp.lt.s32.totalorder %s19, 1
      %s208 = scalar_select %p207, %s19, 1
      %p209 = scmp.lt.s32.totalorder %s206, 1
      %s210 = scalar_select %p209, %s206, 1
      %s211 = smul.addr %s208, 2
      %s212 = sadd.s32 %s210, %s211
      %s213 = smul.addr %s212, 4
      %s214 = scalar_lea.vmem %s0, %s213
      %p215 = pneg %p50
      %p216 = pneg %p47
      %s217 = smul.u32 2, %s20
      %p218 = scmp.lt.s32.totalorder %s19, 1
      %s219 = scalar_select %p218, %s19, 1
      %p220 = scmp.lt.s32.totalorder %s217, 1
      %s221 = scalar_select %p220, %s217, 1
      %s222 = smul.addr %s219, 2
      %s223 = sadd.s32 %s221, %s222
      %s224 = smul.addr %s223, 2
      %s225 = scalar_lea.vmem %s1, %s224
      %p226 = pneg %p78
      %p227 = pneg %p75
      %p228 = pneg %p99
      %p229 = pneg %p96
      %p230 = pneg %p120
      %p231 = pneg %p117
      %p232 = pneg %p148
      %p233 = pneg %p145
      %s234 = smul.u32 2, %s20
      %p235 = scmp.lt.s32.totalorder %s19, 1
      %s236 = scalar_select %p235, %s19, 1
      %p237 = scmp.lt.s32.totalorder %s234, 1
      %s238 = scalar_select %p237, %s234, 1
      %s239 = smul.addr %s236, 2
      %s240 = sadd.s32 %s238, %s239
      %s241 = smul.addr %s240, 4
      %s242 = scalar_lea.vmem %s4, %s241
      %s243 = smul.u32 2, %s20
      %p244 = scmp.lt.s32.totalorder %s19, 1
      %s245 = scalar_select %p244, %s19, 1
      %p246 = scmp.lt.s32.totalorder %s243, 1
      %s247 = scalar_select %p246, %s243, 1
      %s248 = smul.addr %s245, 2
      %s249 = sadd.s32 %s247, %s248
      %s250 = smul.addr %s249, 4
      %s251 = scalar_lea.vmem %s0, %s250
      %s252 = smul.u32 2, %s20
      %s253 = smul.u32 2, %s20
      %p254 = scmp.lt.s32.totalorder %s19, 1
      %s255 = scalar_select %p254, %s19, 1
      %p256 = scmp.lt.s32.totalorder %s253, 1
      %s257 = scalar_select %p256, %s253, 1
      %s258 = smul.addr %s255, 2
      %s259 = sadd.s32 %s257, %s258
      %s260 = smul.addr %s259, 2
      %s261 = scalar_lea.vmem %s1, %s260
      %s262 = smul.u32 2, %s20
      %s263 = smul.u32 2, %s20
      %p264 = scmp.lt.s32.totalorder %s19, 1
      %s265 = scalar_select %p264, %s19, 1
      %p266 = scmp.lt.s32.totalorder %s263, 1
      %s267 = scalar_select %p266, %s263, 1
      %s268 = smul.addr %s265, 2
      %s269 = sadd.s32 %s267, %s268
      %s270 = smul.addr %s269, 4
      %s271 = scalar_lea.vmem %s4, %s270
      %s272 = smul.u32 2, %s20
      %v273 = vld [vmem:[%s261] sm:$0xf]
      %v274 = vunpack.c.l.bf16 %v273
      %v275 = vld [vmem:[%s2] sm:$0xf]
      %277 = vset.pattern.permute.xlu0 0
      %278 = vperm.xlu0 %277, %v275
      %v279 = vpop.permute.xlu0 %278
      %v281 = vunpack.c.l.s4 839922192
      %v282 = vunpack.c.0.s8 %v281
      %v283 = vlaneseq
      %v284 = vshrl.u32 %v283, 7
      %v285 = vsub.s32 %v282, %v284
      %v286 = vrot.slane %v279, %v285
      %v288 = vmul.f32 %v274, %v286
      %v289 = vld [vmem:[%s3] sm:$0xf]
      %291 = vset.pattern.permute.xlu0 0
      %292 = vperm.xlu0 %291, %v289
      %v293 = vpop.permute.xlu0 %292
      %v295 = vunpack.c.l.s4 839922192
      %v296 = vunpack.c.0.s8 %v295
      %v297 = vlaneseq
      %v298 = vshrl.u32 %v297, 7
      %v299 = vsub.s32 %v296, %v298
      %v300 = vrot.slane %v293, %v299
      %v302 = vadd.f32 %v288, %v300
      %v303 = vtanh.pop %v302
      %v304 = vld [vmem:[%s251] sm:$0xff]
      %v305 = vadd.f32 %v304, %v303
      %v306 = vtanh.pop %v305
      %307 = vst [vmem:[%s271] sm:$0xff] %v306
      %s308 = smul.u32 2, %s20
      %p309 = scmp.lt.s32.totalorder %s19, 1
      %s310 = scalar_select %p309, %s19, 1
      %p311 = scmp.lt.s32.totalorder %s308, 1
      %s312 = scalar_select %p311, %s308, 1
      %s313 = smul.addr %s310, 2
      %s314 = sadd.s32 %s312, %s313
      %s315 = smul.addr %s314, 4
      %s316 = scalar_lea.vmem %s4, %s315
      // Predicated region
      $region37: #{denoise_forward.5} parent=35 // pred_check
        %p317 = pneg %p145
      $region38: #{denoise_forward.5} parent=35 // pred_check_branch
        %319 = sbr.rel (%p317) target = $region40
      $region39: #{denoise_forward.5} parent=35 // pred_region
        %s320 = smul.u32 2, %s20
      $region40: #{denoise_forward.5} parent=35 // pred_fallthru
        _
    $region36: #{denoise_forward.5} parent=5 // pred_fallthru
      _
    %p321 = scmp.le.s32.totalorder 2, %s10
    // Predicated region
    $region41: #{denoise_forward.5} parent=5 // pred_check
      %p322 = pneg %p321
    $region42: #{denoise_forward.5} parent=5 // pred_check_branch
      %324 = sbr.rel (%p322) target = $region44
    $region43: #{denoise_forward.5} parent=5 // pred_region
      %s325 = ssub.s32 %s10, 2
      // Predicated region
      $region45: #{denoise_forward.5} parent=43 // pred_check
        %p326 = pneg %p151
      $region46: #{denoise_forward.5} parent=43 // pred_check_branch
        %328 = sbr.rel (%p326) target = $region48
      $region47: #{denoise_forward.5} parent=43 // pred_region
        %s329 = smul.u32 2, %s22
        %p330 = scmp.lt.s32.totalorder %s21, 1
        %s331 = scalar_select %p330, %s21, 1
        %p332 = scmp.lt.s32.totalorder %s329, 1
        %s333 = scalar_select %p332, %s329, 1
        %s334 = smul.addr %s331, 2
        %s335 = sadd.s32 %s333, %s334
        %s336 = smul.addr %s335, 4
        %s337 = scalar_lea.vmem %s4, %s336
      $region48: #{denoise_forward.5} parent=43 // pred_fallthru
        _
    $region44: #{denoise_forward.5} parent=5 // pred_fallthru
      _
  $region6: #{denoise_forward.5} parent=0 // loop_footer
    %s14 = sadd.s32 1, %s10
  $region7: #{denoise_forward.5} parent=0 // loop_footer_branch
    %9 = sbr.rel target = $region3
  $region8: #{denoise_forward.5} parent=0 // loop_exit
    _

// kernel: denoise_forward.4
$region0: #{denoise_forward.4}
  #allocation0 [shape = 'u32[]', space=smem, size = 0x4, offset = 0x4, fixed_abs, tag = 'smem constant byte address 0x4 - core index']
  #allocation1 [shape = 'u32[144,128]{1,0:T(1,128)}', space=vmem, size = 0x12000, scoped, tag = 'internal scratch']
  #allocation2 [shape = 'bf16[8,512]{1,0:T(8,128)(2,1)}', space=vmem, size = 0x2000, scoped, tag = 'scratch operand']
  %s0 = inlined_call_operand.vmem [shape: bf16[2,8,256], index: 0, kind: input, shape index: {}]
  %s1 = inlined_call_operand.vmem [shape: bf16[9,4,8], index: 1, kind: input, shape index: {}]
  %s2 = inlined_call_operand.vmem [shape: bf16[2,256], index: 2, kind: input, shape index: {}]
  %s3 = inlined_call_operand.vmem [shape: f32[8,1], index: 3, kind: input, shape index: {}]
  %s4 = inlined_call_operand.vmem [shape: f32[8,1], index: 4, kind: input, shape index: {}]
  %s5 = inlined_call_operand.vmem [shape: bf16[2,4,256], index: 5, kind: output, shape index: {0}]
  %s6 = inlined_call_operand.vmem [shape: f32[2,4,2], index: 6, kind: output, shape index: {1}]
  %7 = xla_tuple %s5, %s6
  %s8 = sld [smem:[#allocation0]]
  $region61: #{denoise_forward.4} parent=0
    _
  %s10 = ssub.s32 1, %s8
  %s11 = scalar_select 0, %s10, %s8
  loop: start=0, step=1, limit=4
  $region2: #{denoise_forward.4} parent=0 // loop_pre_header
    _
  $region3: #{denoise_forward.4} parent=0 // loop_header
    %s13 = sphi 0, %s17
    %p14 = scmp.ge.s32.totalorder %s13, 4
    %s23 = sphi 0, %s25
    %s26 = sphi 0, %s23
    %s27 = sphi 0, %s26
    %s43 = sphi 0, %s27
    %s47 = sphi 0, %s47
    %s49 = sphi 0, %s47
    %s50 = sphi 0, %s49
    %s64 = sphi 0, %s50
    %s68 = sphi 0, %s68
    %s70 = sphi 0, %s68
    %s71 = sphi 0, %s70
    %s85 = sphi 0, %s71
    %s89 = sphi 0, %s89
    %s91 = sphi 0, %s89
    %s92 = sphi 0, %s91
    %s106 = sphi 0, %s92
    %s110 = sphi 0, %s110
    %s112 = sphi 0, %s110
    %s113 = sphi 0, %s112
    %s127 = sphi 0, %s113
    %s133 = sphi 0, %s135
    %s136 = sphi 0, %s133
    %s137 = sphi 0, %s136
    %s153 = sphi 0, %s137
    %s159 = sphi 0, %s161
    %s162 = sphi 0, %s159
    %s163 = sphi 0, %s162
    %s179 = sphi 0, %s163
  $region4: #{denoise_forward.4} parent=0 // loop_header_branch
    %16 = sbr.rel (%p14) target = $region8
  $region5: #{denoise_forward.4} parent=0 // loop_body
    %s18 = ssub.s32 %s13, 1
    %s19 = ssub.s32 %s13, 2
    %s20 = sadd.s32 %s13, 1
    %s21 = ssub.s32 %s13, %s20
    %p22 = scmp.eq.s32.totalorder %s21, 0
    %s24 = sadd.s32 %s23, 1
    %s25 = scalar_select %p22, %s23, %s24
    %p28 = pneg %p22
    %p29 = scmp.eq.s32.totalorder %s13, 1
    %p30 = por %p28, %p29
    %p31 = scmp.ne.s32.totalorder %s23, %s26
    %p32 = scmp.eq.s32.totalorder %s13, 0
    %p33 = por %p31, %p32
    %p34 = scmp.ne.s32.totalorder %s23, %s26
    %p35 = scmp.eq.s32.totalorder %s18, 1
    %p36 = por %p34, %p35
    %p37 = scmp.ne.s32.totalorder %s26, %s27
    %p38 = scmp.eq.s32.totalorder %s18, 0
    %p39 = por %p37, %p38
    %p40 = scmp.ne.s32.totalorder %s26, %s27
    %p41 = scmp.eq.s32.totalorder %s19, 1
    %p42 = por %p40, %p41
    %p44 = scmp.ne.s32.totalorder %s27, %s43
    %p45 = scmp.eq.s32.totalorder %s19, 0
    %p46 = por %p44, %p45
    %s48 = sadd.s32 %s47, 1
    %p51 = scmp.eq.s32.totalorder %s13, 1
    %p52 = scmp.ne.s32.totalorder %s47, %s49
    %p53 = scmp.eq.s32.totalorder %s13, 0
    %p54 = por %p52, %p53
    %p55 = scmp.ne.s32.totalorder %s47, %s49
    %p56 = scmp.eq.s32.totalorder %s18, 1
    %p57 = por %p55, %p56
    %p58 = scmp.ne.s32.totalorder %s49, %s50
    %p59 = scmp.eq.s32.totalorder %s18, 0
    %p60 = por %p58, %p59
    %p61 = scmp.ne.s32.totalorder %s49, %s50
    %p62 = scmp.eq.s32.totalorder %s19, 1
    %p63 = por %p61, %p62
    %p65 = scmp.ne.s32.totalorder %s50, %s64
    %p66 = scmp.eq.s32.totalorder %s19, 0
    %p67 = por %p65, %p66
    %s69 = sadd.s32 %s68, 1
    %p72 = scmp.eq.s32.totalorder %s13, 1
    %p73 = scmp.ne.s32.totalorder %s68, %s70
    %p74 = scmp.eq.s32.totalorder %s13, 0
    %p75 = por %p73, %p74
    %p76 = scmp.ne.s32.totalorder %s68, %s70
    %p77 = scmp.eq.s32.totalorder %s18, 1
    %p78 = por %p76, %p77
    %p79 = scmp.ne.s32.totalorder %s70, %s71
    %p80 = scmp.eq.s32.totalorder %s18, 0
    %p81 = por %p79, %p80
    %p82 = scmp.ne.s32.totalorder %s70, %s71
    %p83 = scmp.eq.s32.totalorder %s19, 1
    %p84 = por %p82, %p83
    %p86 = scmp.ne.s32.totalorder %s71, %s85
    %p87 = scmp.eq.s32.totalorder %s19, 0
    %p88 = por %p86, %p87
    %s90 = sadd.s32 %s89, 1
    %p93 = scmp.eq.s32.totalorder %s13, 1
    %p94 = scmp.ne.s32.totalorder %s89, %s91
    %p95 = scmp.eq.s32.totalorder %s13, 0
    %p96 = por %p94, %p95
    %p97 = scmp.ne.s32.totalorder %s89, %s91
    %p98 = scmp.eq.s32.totalorder %s18, 1
    %p99 = por %p97, %p98
    %p100 = scmp.ne.s32.totalorder %s91, %s92
    %p101 = scmp.eq.s32.totalorder %s18, 0
    %p102 = por %p100, %p101
    %p103 = scmp.ne.s32.totalorder %s91, %s92
    %p104 = scmp.eq.s32.totalorder %s19, 1
    %p105 = por %p103, %p104
    %p107 = scmp.ne.s32.totalorder %s92, %s106
    %p108 = scmp.eq.s32.totalorder %s19, 0
    %p109 = por %p107, %p108
    %s111 = sadd.s32 %s110, 1
    %p114 = scmp.eq.s32.totalorder %s13, 1
    %p115 = scmp.ne.s32.totalorder %s110, %s112
    %p116 = scmp.eq.s32.totalorder %s13, 0
    %p117 = por %p115, %p116
    %p118 = scmp.ne.s32.totalorder %s110, %s112
    %p119 = scmp.eq.s32.totalorder %s18, 1
    %p120 = por %p118, %p119
    %p121 = scmp.ne.s32.totalorder %s112, %s113
    %p122 = scmp.eq.s32.totalorder %s18, 0
    %p123 = por %p121, %p122
    %p124 = scmp.ne.s32.totalorder %s112, %s113
    %p125 = scmp.eq.s32.totalorder %s19, 1
    %p126 = por %p124, %p125
    %p128 = scmp.ne.s32.totalorder %s113, %s127
    %p129 = scmp.eq.s32.totalorder %s19, 0
    %p130 = por %p128, %p129
    %s131 = ssub.s32 %s13, %s20
    %p132 = scmp.eq.s32.totalorder %s131, 0
    %s134 = sadd.s32 %s133, 1
    %s135 = scalar_select %p132, %s133, %s134
    %p138 = pneg %p132
    %p139 = scmp.eq.s32.totalorder %s13, 1
    %p140 = por %p138, %p139
    %p141 = scmp.ne.s32.totalorder %s133, %s136
    %p142 = scmp.eq.s32.totalorder %s13, 0
    %p143 = por %p141, %p142
    %p144 = scmp.ne.s32.totalorder %s133, %s136
    %p145 = scmp.eq.s32.totalorder %s18, 1
    %p146 = por %p144, %p145
    %p147 = scmp.ne.s32.totalorder %s136, %s137
    %p148 = scmp.eq.s32.totalorder %s18, 0
    %p149 = por %p147, %p148
    %p150 = scmp.ne.s32.totalorder %s136, %s137
    %p151 = scmp.eq.s32.totalorder %s19, 1
    %p152 = por %p150, %p151
    %p154 = scmp.ne.s32.totalorder %s137, %s153
    %p155 = scmp.eq.s32.totalorder %s19, 0
    %p156 = por %p154, %p155
    %s157 = ssub.s32 %s13, %s20
    %p158 = scmp.eq.s32.totalorder %s157, 0
    %s160 = sadd.s32 %s159, 1
    %s161 = scalar_select %p158, %s159, %s160
    %p164 = pneg %p158
    %p165 = scmp.eq.s32.totalorder %s13, 1
    %p166 = por %p164, %p165
    %p167 = scmp.ne.s32.totalorder %s159, %s162
    %p168 = scmp.eq.s32.totalorder %s13, 0
    %p169 = por %p167, %p168
    %p170 = scmp.ne.s32.totalorder %s159, %s162
    %p171 = scmp.eq.s32.totalorder %s18, 1
    %p172 = por %p170, %p171
    %p173 = scmp.ne.s32.totalorder %s162, %s163
    %p174 = scmp.eq.s32.totalorder %s18, 0
    %p175 = por %p173, %p174
    %p176 = scmp.ne.s32.totalorder %s162, %s163
    %p177 = scmp.eq.s32.totalorder %s19, 1
    %p178 = por %p176, %p177
    %p180 = scmp.ne.s32.totalorder %s163, %s179
    %p181 = scmp.eq.s32.totalorder %s19, 0
    %p182 = por %p180, %p181
    %p183 = scmp.le.s32.totalorder 1, %s13
    %p184 = scmp.lt.s32.totalorder %s13, 3
    %p185 = pnand %p183, %p184
    %p186 = pneg %p185
    // Predicated region
    $region9: #{denoise_forward.4} parent=5 // pred_check
      _
    $region10: #{denoise_forward.4} parent=5 // pred_check_branch
      %188 = sbr.rel (%p185) target = $region12
    $region11: #{denoise_forward.4} parent=5 // pred_region
      %s189 = ssub.s32 %s13, 1
      // Predicated region
      $region13: #{denoise_forward.4} parent=11 // pred_check
        %p190 = pneg %p60
      $region14: #{denoise_forward.4} parent=11 // pred_check_branch
        %192 = sbr.rel (%p190) target = $region16
      $region15: #{denoise_forward.4} parent=11 // pred_region
        _
      $region16: #{denoise_forward.4} parent=11 // pred_fallthru
        _
      // Predicated region
      $region17: #{denoise_forward.4} parent=11 // pred_check
        %p193 = pneg %p81
      $region18: #{denoise_forward.4} parent=11 // pred_check_branch
        %195 = sbr.rel (%p193) target = $region20
      $region19: #{denoise_forward.4} parent=11 // pred_region
        _
      $region20: #{denoise_forward.4} parent=11 // pred_fallthru
        _
      // Predicated region
      $region21: #{denoise_forward.4} parent=11 // pred_check
        %p196 = pneg %p102
      $region22: #{denoise_forward.4} parent=11 // pred_check_branch
        %198 = sbr.rel (%p196) target = $region24
      $region23: #{denoise_forward.4} parent=11 // pred_region
        _
      $region24: #{denoise_forward.4} parent=11 // pred_fallthru
        _
      // Predicated region
      $region25: #{denoise_forward.4} parent=11 // pred_check
        %p199 = pneg %p123
      $region26: #{denoise_forward.4} parent=11 // pred_check_branch
        %201 = sbr.rel (%p199) target = $region28
      $region27: #{denoise_forward.4} parent=11 // pred_region
        _
      $region28: #{denoise_forward.4} parent=11 // pred_fallthru
        _
    $region12: #{denoise_forward.4} parent=5 // pred_fallthru
      _
    %p202 = scmp.lt.s32.totalorder %s13, 2
    // Predicated region
    $region29: #{denoise_forward.4} parent=5 // pred_check
      %p203 = pneg %p202
    $region30: #{denoise_forward.4} parent=5 // pred_check_branch
      %205 = sbr.rel (%p203) target = $region32
    $region31: #{denoise_forward.4} parent=5 // pred_region
      // Predicated region
      $region33: #{denoise_forward.4} parent=31 // pred_check
        %p206 = pneg %p33
      $region34: #{denoise_forward.4} parent=31 // pred_check_branch
        %208 = sbr.rel (%p206) target = $region36
      $region35: #{denoise_forward.4} parent=31 // pred_region
        %p209 = scmp.lt.s32.totalorder %s13, 1
        %s210 = scalar_select %p209, %s13, 1
        %s211 = smul.addr %s210, 2
        %s212 = smul.addr %s211, 4
        %s213 = scalar_lea.vmem %s0, %s212
      $region36: #{denoise_forward.4} parent=31 // pred_fallthru
        _
    $region32: #{denoise_forward.4} parent=5 // pred_fallthru
      _
    %p214 = scmp.le.s32.totalorder 1, %s13
    %p215 = scmp.lt.s32.totalorder %s13, 3
    %p216 = pnand %p214, %p215
    %p217 = pneg %p216
    // Predicated region
    $region37: #{denoise_forward.4} parent=5 // pred_check
      _
    $region38: #{denoise_forward.4} parent=5 // pred_check_branch
      %219 = sbr.rel (%p216) target = $region40
    $region39: #{denoise_forward.4} parent=5 // pred_region
      %s220 = ssub.s32 %s13, 1
      %p221 = scmp.lt.s32.totalorder %s18, 1
      %s222 = scalar_select %p221, %s18, 1
      %s223 = smul.addr %s222, 2
      %s224 = smul.addr %s223, 4
      %s225 = scalar_lea.vmem %s0, %s224
      %p226 = pneg %p39
      %p227 = pneg %p36
      %p228 = pneg %p60
      %p229 = pneg %p57
      %p230 = pneg %p81
      %p231 = pneg %p78
      %p232 = pneg %p102
      %p233 = pneg %p99
      %p234 = pneg %p123
      %p235 = pneg %p120
      %p236 = pneg %p149
      %p237 = pneg %p146
      %p238 = scmp.lt.s32.totalorder %s18, 1
      %s239 = scalar_select %p238, %s18, 1
      %s240 = smul.addr %s239, 2
      %s241 = smul.addr %s240, 2
      %s242 = scalar_lea.vmem %s5, %s241
      %p243 = pneg %p175
      %p244 = pneg %p172
      %p245 = scmp.lt.s32.totalorder %s18, 1
      %s246 = scalar_select %p245, %s18, 1
      %s247 = smul.addr %s246, 4
      %s248 = scalar_lea.vmem %s6, %s247
      %p249 = scmp.lt.s32.totalorder %s18, 1
      %s250 = scalar_select %p249, %s18, 1
      %s251 = smul.addr %s250, 2
      %s252 = smul.addr %s251, 4
      %s253 = scalar_lea.vmem %s0, %s252
      %p254 = scmp.lt.s32.totalorder %s18, 1
      %s255 = scalar_select %p254, %s18, 1
      %s256 = smul.addr %s255, 2
      %s257 = smul.addr %s256, 2
      %s258 = scalar_lea.vmem %s5, %s257
      %p259 = scmp.lt.s32.totalorder %s18, 1
      %s260 = scalar_select %p259, %s18, 1
      %s261 = smul.addr %s260, 4
      %s262 = scalar_lea.vmem %s6, %s261
      %v264 = vld [vmem:[%s253] sm:$0xff]
      %v265 = vunpack.c.l.bf16 %v264
      %v266 = vunpack.c.h.bf16 %v264
      %v267 = vld [vmem:[%s3] sm:$0xff]
      %269 = vset.pattern.permute.xlu0 0
      %270 = vperm.xlu0 %269, %v267
      %v271 = vpop.permute.xlu0 %270
      %v273 = vmul.f32 %v265, %v271
      %v274 = vmul.f32 %v266, %v271
      %v275 = vld [vmem:[%s4] sm:$0xff]
      %277 = vset.pattern.permute.xlu0 0
      %278 = vperm.xlu0 %277, %v275
      %v279 = vpop.permute.xlu0 %278
      %v281 = vadd.f32 %v273, %v279
      %v282 = vadd.f32 %v274, %v279
      %v283 = vtanh.pop %v281
      %v284 = vtanh.pop %v282
      %285 = vst [vmem:[#allocation2] sm:$0xf] 0
      %286 = vst [vmem:[#allocation2 + $0xc] sm:$0xf] 0
      %v287 = vpack.c.bf16 %v283, %v283
      %v288 = vpack.c.bf16 %v284, %v284
      %v291 = vunpack.c.l.b16 %v287
      %v292 = vunpack.c.l.b16 %v288
      %v293 = vpack.c.b16 %v292, %v291
      %295 = vst [vmem:[#allocation2 + $0x4] sm:$0xff] %v293
      %v296 = vld [vmem:[%s2] sm:$0x3]
      %v297 = vld [vmem:[#allocation2] sm:$0xff]
      %v298 = vld [vmem:[#allocation2 + $0x8] sm:$0xf]
      %v301 = vunpack.c.l.s4 1966171168
      %v302 = vunpack.c.0.s8 %v301
      %v303 = vlaneseq
      %v304 = vshrl.u32 %v303, 7
      %v305 = vsub.s32 %v302, %v304
      %v306 = vrot.slane %v296, %v305
      %v307 = vcombine.high %v306, %v306
      %v309 = vunpack.c.l.s4 1966171168
      %v310 = vunpack.c.0.s8 %v309
      %v311 = vlaneseq
      %v312 = vshrl.u32 %v311, 7
      %v313 = vsub.s32 %v310, %v312
      %v314 = vrot.slane %v306, %v313
      %v316 = vunpack.c.l.s4 1966171168
      %v317 = vunpack.c.0.s8 %v316
      %v318 = vlaneseq
      %v319 = vshrl.u32 %v318, 7
      %v320 = vsub.s32 %v317, %v319
      %v321 = vrot.slane %v307, %v320
      %v323 = vpack.i.b16 %v314, %v314
      %v325 = vlaneseq
      %v326 = vshrl.u32 %v325, 7
      %v327 = vsub.s32 0, %v326
      %v328 = vrot.slane %v323, %v327
      %v330 = vpack.i.b16 %v321, %v321
      %v332 = vlaneseq
      %v333 = vshrl.u32 %v332, 7
      %v334 = vsub.s32 0, %v333
      %v335 = vrot.slane %v330, %v334
      %v338 = vunpack.c.l.b16 %v328
      %v339 = vunpack.c.l.b16 %v335
      %v340 = vpack.c.b16 %v339, %v338
      %341 = vrot.lane.b32.xlu0 %v340, 111
      %v342 = vpop.permute.xlu0 %341
      %v343 = vrot.slane %v342, 4
      %vm344 = vcmask 908288
      %v345 = vsel %vm344, %v343, %v342
      %v348 = vmul.bf16 %v297, %v345
      %v349 = vmul.bf16 %v298, %v343
      %v350 = vld [vmem:[%s1] sm:$0x3]
      %s351 = scalar_lea.vmem %s1, 2
      %v352 = vld [vmem:[%s351] sm:$0x3]
      %v355 = vunpack.c.l.b16 %v297
      %v356 = vunpack.c.h.b16 %v297
      %v357 = vunpack.c.l.b16 %v298
      %v358 = vpack.c.b16 %v355, %v355
      %v359 = vpack.c.b16 %v356, %v356
      %v360 = vpack.c.b16 %v357, %v357
      %361 = vrot.lane.b32.xlu0 %v358, 16
      %v362 = vpop.permute.xlu0 %361
      %363 = vrot.lane.b32.xlu0 %v359, 16
      %v364 = vpop.permute.xlu0 %363
      %365 = vrot.lane.b32.xlu0 %v360, 16
      %v366 = vpop.permute.xlu0 %365
      %vm367 = vcmask 130048
      %v368 = vsel %vm367, %v362, %v364
      %v369 = vsel %vm367, %v364, %v366
      %vm370 = vcmask 64512
      %v372 = vsel %vm370, %v352, 0
      %vm374 = vcmask 1043456
      %v376 = vsel %vm374, %v368, 0
      %v379 = vsel %vm374, %v369, 0
      %381 = vmatprep.subr.bf16.mxu0 %v379
      %382 = vmatpush1.bf16.msra.mxu0 %v376
      %383 = vmatprep.subr.bf16.mxu0 0
      %384 = vmatpush1.bf16.msra.mxu0 0
      %385 = vmatprep.subr.bf16.mxu0 0
      %386 = vmatpush1.bf16.msra.mxu0 0
      %387 = vmatprep.subr.bf16.mxu0 0
      %388 = vmatpush1.bf16.msra.mxu0 0
      %389 = vmatprep.subr.bf16.mxu0 0
      %390 = vmatpush1.bf16.msra.mxu0 0
      %391 = vmatprep.subr.bf16.mxu0 0
      %392 = vmatpush1.bf16.msra.mxu0 0
      %393 = vmatprep.subr.bf16.mxu0 0
      %394 = vmatpush1.bf16.msra.mxu0 0
      %395 = vmatprep.subr.bf16.mxu0 0
      %396 = vmatpush1.bf16.msra.mxu0 0
      %397 = vmatprep.subr.bf16.mxu0 0
      %398 = vmatpush1.bf16.msra.mxu0 0
      %399 = vmatprep.subr.bf16.mxu0 0
      %400 = vmatpush1.bf16.msra.mxu0 0
      %401 = vmatprep.subr.bf16.mxu0 0
      %402 = vmatpush1.bf16.msra.mxu0 0
      %403 = vmatprep.subr.bf16.mxu0 0
      %404 = vmatpush1.bf16.msra.mxu0 0
      %405 = vmatprep.subr.bf16.mxu0 0
      %406 = vmatpush1.bf16.msra.mxu0 0
      %407 = vmatprep.subr.bf16.mxu0 0
      %408 = vmatpush1.bf16.msra.mxu0 0
      %409 = vmatprep.subr.bf16.mxu0 0
      %410 = vmatpush1.bf16.msra.mxu0 0
      %411 = vmatprep.subr.bf16.mxu0 0
      %412 = vmatpush1.bf16.msra.mxu0 0
      %413 = vmatprep.mubr.bf16.mxu0 0
      %414 = vmatmul.mubr.bf16.gmra.mrb[0].mxu0 %v372
      %v415 = vpop.f32.mrb[0].mxu0
      %v416 = vadd.f32 0.0, %v415
      %v417 = vpop.f32.mrb[0].mxu0
      %v418 = vadd.f32 0.0, %v417
      %v419 = vpop.f32.mrb[0].mxu0
      %v420 = vpop.f32.mrb[0].mxu0
      %421 = vdwg.mxu0
      %v424 = vunpack.c.l.b16 %v348
      %v425 = vunpack.c.h.b16 %v348
      %v426 = vunpack.c.l.b16 %v349
      %v427 = vpack.c.b16 %v424, %v424
      %v428 = vpack.c.b16 %v425, %v425
      %v429 = vpack.c.b16 %v426, %v426
      %430 = vrot.lane.b32.xlu0 %v427, 17
      %v431 = vpop.permute.xlu0 %430
      %432 = vrot.lane.b32.xlu0 %v428, 17
      %v433 = vpop.permute.xlu0 %432
      %434 = vrot.lane.b32.xlu0 %v429, 17
      %v435 = vpop.permute.xlu0 %434
      %vm436 = vcmask 138240
      %v437 = vsel %vm436, %v431, %v433
      %v438 = vsel %vm436, %v433, %v435
      %v440 = vsel %vm370, %v350, 0
      %v443 = vsel %vm374, %v437, 0
      %v446 = vsel %vm374, %v438, 0
      %448 = vmatprep.subr.bf16.mxu0 %v446
      %449 = vmatpush1.bf16.msra.mxu0 %v443
      %450 = vmatprep.subr.bf16.mxu0 0
      %451 = vmatpush1.bf16.msra.mxu0 0
      %452 = vmatprep.subr.bf16.mxu0 0
      %453 = vmatpush1.bf16.msra.mxu0 0
      %454 = vmatprep.subr.bf16.mxu0 0
      %455 = vmatpush1.bf16.msra.mxu0 0
      %456 = vmatprep.subr.bf16.mxu0 0
      %457 = vmatpush1.bf16.msra.mxu0 0
      %458 = vmatprep.subr.bf16.mxu0 0
      %459 = vmatpush1.bf16.msra.mxu0 0
      %460 = vmatprep.subr.bf16.mxu0 0
      %461 = vmatpush1.bf16.msra.mxu0 0
      %462 = vmatprep.subr.bf16.mxu0 0
      %463 = vmatpush1.bf16.msra.mxu0 0
      %464 = vmatprep.subr.bf16.mxu0 0
      %465 = vmatpush1.bf16.msra.mxu0 0
      %466 = vmatprep.subr.bf16.mxu0 0
      %467 = vmatpush1.bf16.msra.mxu0 0
      %468 = vmatprep.subr.bf16.mxu0 0
      %469 = vmatpush1.bf16.msra.mxu0 0
      %470 = vmatprep.subr.bf16.mxu0 0
      %471 = vmatpush1.bf16.msra.mxu0 0
      %472 = vmatprep.subr.bf16.mxu0 0
      %473 = vmatpush1.bf16.msra.mxu0 0
      %474 = vmatprep.subr.bf16.mxu0 0
      %475 = vmatpush1.bf16.msra.mxu0 0
      %476 = vmatprep.subr.bf16.mxu0 0
      %477 = vmatpush1.bf16.msra.mxu0 0
      %478 = vmatprep.subr.bf16.mxu0 0
      %479 = vmatpush1.bf16.msra.mxu0 0
      %480 = vmatprep.mubr.bf16.mxu0 0
      %481 = vmatmul.mubr.bf16.gmra.mrb[0].mxu0 %v440
      %v482 = vpop.f32.mrb[0].mxu0
      %v483 = vadd.f32 %v416, %v482
      %v484 = vpop.f32.mrb[0].mxu0
      %v485 = vadd.f32 %v418, %v484
      %v486 = vpop.f32.mrb[0].mxu0
      %v487 = vpop.f32.mrb[0].mxu0
      %488 = vdwg.mxu0
      %v489 = vshrl.u32 %v314, 16
      %v490 = vpack.i.b16 %v489, %v489
      %v492 = vlaneseq
      %v493 = vshrl.u32 %v492, 7
      %v494 = vsub.s32 0, %v493
      %v495 = vrot.slane %v490, %v494
      %v496 = vshrl.u32 %v321, 16
      %v497 = vpack.i.b16 %v496, %v496
      %v499 = vlaneseq
      %v500 = vshrl.u32 %v499, 7
      %v501 = vsub.s32 0, %v500
      %v502 = vrot.slane %v497, %v501
      %v505 = vunpack.c.l.b16 %v495
      %v506 = vunpack.c.l.b16 %v502
      %v507 = vpack.c.b16 %v506, %v505
      %508 = vrot.lane.b32.xlu0 %v507, 113
      %v509 = vpop.permute.xlu0 %508
      %v510 = vrot.slane %v509, 4
      %vm511 = vcmask 924672
      %v512 = vsel %vm511, %v510, %v509
      %v515 = vmul.bf16 %v297, %v512
      %v516 = vmul.bf16 %v298, %v510
      %s517 = scalar_lea.vmem %s1, 4
      %v518 = vld [vmem:[%s517] sm:$0x3]
      %v521 = vunpack.c.l.b16 %v515
      %v522 = vunpack.c.h.b16 %v515
      %v523 = vunpack.c.l.b16 %v516
      %v524 = vpack.c.b16 %v521, %v521
      %v525 = vpack.c.b16 %v522, %v522
      %v526 = vpack.c.b16 %v523, %v523
      %527 = vrot.lane.b32.xlu0 %v524, 15
      %v528 = vpop.permute.xlu0 %527
      %529 = vrot.lane.b32.xlu0 %v525, 15
      %v530 = vpop.permute.xlu0 %529
      %531 = vrot.lane.b32.xlu0 %v526, 15
      %v532 = vpop.permute.xlu0 %531
      %vm533 = vcmask 121856
      %v534 = vsel %vm533, %v528, %v530
      %v535 = vsel %vm533, %v530, %v532
      %v537 = vsel %vm370, %v518, 0
      %v540 = vsel %vm374, %v534, 0
      %v543 = vsel %vm374, %v535, 0
      %545 = vmatprep.subr.bf16.mxu0 %v543
      %546 = vmatpush1.bf16.msra.mxu0 %v540
      %547 = vmatprep.subr.bf16.mxu0 0
      %548 = vmatpush1.bf16.msra.mxu0 0
      %549 = vmatprep.subr.bf16.mxu0 0
      %550 = vmatpush1.bf16.msra.mxu0 0
      %551 = vmatprep.subr.bf16.mxu0 0
      %552 = vmatpush1.bf16.msra.mxu0 0
      %553 = vmatprep.subr.bf16.mxu0 0
      %554 = vmatpush1.bf16.msra.mxu0 0
      %555 = vmatprep.subr.bf16.mxu0 0
      %556 = vmatpush1.bf16.msra.mxu0 0
      %557 = vmatprep.subr.bf16.mxu0 0
      %558 = vmatpush1.bf16.msra.mxu0 0
      %559 = vmatprep.subr.bf16.mxu0 0
      %560 = vmatpush1.bf16.msra.mxu0 0
      %561 = vmatprep.subr.bf16.mxu0 0
      %562 = vmatpush1.bf16.msra.mxu0 0
      %563 = vmatprep.subr.bf16.mxu0 0
      %564 = vmatpush1.bf16.msra.mxu0 0
      %565 = vmatprep.subr.bf16.mxu0 0
      %566 = vmatpush1.bf16.msra.mxu0 0
      %567 = vmatprep.subr.bf16.mxu0 0
      %568 = vmatpush1.bf16.msra.mxu0 0
      %569 = vmatprep.subr.bf16.mxu0 0
      %570 = vmatpush1.bf16.msra.mxu0 0
      %571 = vmatprep.subr.bf16.mxu0 0
      %572 = vmatpush1.bf16.msra.mxu0 0
      %573 = vmatprep.subr.bf16.mxu0 0
      %574 = vmatpush1.bf16.msra.mxu0 0
      %575 = vmatprep.subr.bf16.mxu0 0
      %576 = vmatpush1.bf16.msra.mxu0 0
      %577 = vmatprep.mubr.bf16.mxu0 0
      %578 = vmatmul.mubr.bf16.gmra.mrb[0].mxu0 %v537
      %v579 = vpop.f32.mrb[0].mxu0
      %v580 = vadd.f32 0.0, %v579
      %v581 = vpop.f32.mrb[0].mxu0
      %v582 = vadd.f32 0.0, %v581
      %v583 = vpop.f32.mrb[0].mxu0
      %v584 = vpop.f32.mrb[0].mxu0
      %585 = vdwg.mxu0
      %v586 = vadd.f32 %v483, %v580
      %v587 = vadd.f32 %v485, %v582
      %v588 = vld [vmem:[#allocation2] sm:$0xff]
      %v589 = vld [vmem:[#allocation2 + $0x8] sm:$0xf]
      %590 = vrot.lane.b32.xlu0 %v340, 127
      %v591 = vpop.permute.xlu0 %590
      %v592 = vrot.slane %v591, 4
      %vm593 = vcmask 1039360
      %v594 = vsel %vm593, %v592, %v591
      %v597 = vmul.bf16 %v588, %v594
      %v598 = vmul.bf16 %v589, %v592
      %s599 = scalar_lea.vmem %s1, 6
      %v600 = vld [vmem:[%s599] sm:$0x3]
      %v603 = vunpack.c.l.b16 %v597
      %v604 = vunpack.c.h.b16 %v597
      %v605 = vunpack.c.l.b16 %v598
      %v606 = vpack.c.b16 %v603, %v603
      %v607 = vpack.c.b16 %v604, %v604
      %v608 = vpack.c.b16 %v605, %v605
      %609 = vrot.lane.b32.xlu0 %v606, 1
      %v610 = vpop.permute.xlu0 %609
      %611 = vrot.lane.b32.xlu0 %v607, 1
      %v612 = vpop.permute.xlu0 %611
      %613 = vrot.lane.b32.xlu0 %v608, 1
      %v614 = vpop.permute.xlu0 %613
      %vm615 = vcmask 7168
      %v616 = vsel %vm615, %v610, %v612
      %v617 = vsel %vm615, %v612, %v614
      %v619 = vsel %vm370, %v600, 0
      %v622 = vsel %vm374, %v616, 0
      %v625 = vsel %vm374, %v617, 0
      %627 = vmatprep.subr.bf16.mxu0 %v625
      %628 = vmatpush1.bf16.msra.mxu0 %v622
      %629 = vmatprep.subr.bf16.mxu0 0
      %630 = vmatpush1.bf16.msra.mxu0 0
      %631 = vmatprep.subr.bf16.mxu0 0
      %632 = vmatpush1.bf16.msra.mxu0 0
      %633 = vmatprep.subr.bf16.mxu0 0
      %634 = vmatpush1.bf16.msra.mxu0 0
      %635 = vmatprep.subr.bf16.mxu0 0
      %636 = vmatpush1.bf16.msra.mxu0 0
      %637 = vmatprep.subr.bf16.mxu0 0
      %638 = vmatpush1.bf16.msra.mxu0 0
      %639 = vmatprep.subr.bf16.mxu0 0
      %640 = vmatpush1.bf16.msra.mxu0 0
      %641 = vmatprep.subr.bf16.mxu0 0
      %642 = vmatpush1.bf16.msra.mxu0 0
      %643 = vmatprep.subr.bf16.mxu0 0
      %644 = vmatpush1.bf16.msra.mxu0 0
      %645 = vmatprep.subr.bf16.mxu0 0
      %646 = vmatpush1.bf16.msra.mxu0 0
      %647 = vmatprep.subr.bf16.mxu0 0
      %648 = vmatpush1.bf16.msra.mxu0 0
      %649 = vmatprep.subr.bf16.mxu0 0
      %650 = vmatpush1.bf16.msra.mxu0 0
      %651 = vmatprep.subr.bf16.mxu0 0
      %652 = vmatpush1.bf16.msra.mxu0 0
      %653 = vmatprep.subr.bf16.mxu0 0
      %654 = vmatpush1.bf16.msra.mxu0 0
      %655 = vmatprep.subr.bf16.mxu0 0
      %656 = vmatpush1.bf16.msra.mxu0 0
      %657 = vmatprep.subr.bf16.mxu0 0
      %658 = vmatpush1.bf16.msra.mxu0 0
      %659 = vmatprep.mubr.bf16.mxu0 0
      %660 = vmatmul.mubr.bf16.gmra.mrb[0].mxu0 %v619
      %v661 = vpop.f32.mrb[0].mxu0
      %v662 = vadd.f32 0.0, %v661
      %v663 = vpop.f32.mrb[0].mxu0
      %v664 = vadd.f32 0.0, %v663
      %v665 = vpop.f32.mrb[0].mxu0
      %v666 = vpop.f32.mrb[0].mxu0
      %667 = vdwg.mxu0
      %v668 = vadd.f32 %v586, %v662
      %v669 = vadd.f32 %v587, %v664
      %v670 = vld [vmem:[#allocation2 + $0x4] sm:$0xff]
      %s671 = scalar_lea.vmem %s1, 8
      %v672 = vld [vmem:[%s671] sm:$0x3]
      %v674 = vunpack.c.l.b16 %v670
      %v675 = vunpack.c.h.b16 %v670
      %v676 = vpack.c.b16 %v674, %v674
      %v677 = vpack.c.b16 %v675, %v675
      %v679 = vsel %vm370, %v672, 0
      %v682 = vsel %vm374, %v676, 0
      %v685 = vsel %vm374, %v677, 0
      %687 = vmatprep.subr.bf16.mxu0 %v685
      %688 = vmatpush1.bf16.msra.mxu0 %v682
      %689 = vmatprep.subr.bf16.mxu0 0
      %690 = vmatpush1.bf16.msra.mxu0 0
      %691 = vmatprep.subr.bf16.mxu0 0
      %692 = vmatpush1.bf16.msra.mxu0 0
      %693 = vmatprep.subr.bf16.mxu0 0
      %694 = vmatpush1.bf16.msra.mxu0 0
      %695 = vmatprep.subr.bf16.mxu0 0
      %696 = vmatpush1.bf16.msra.mxu0 0
      %697 = vmatprep.subr.bf16.mxu0 0
      %698 = vmatpush1.bf16.msra.mxu0 0
      %699 = vmatprep.subr.bf16.mxu0 0
      %700 = vmatpush1.bf16.msra.mxu0 0
      %701 = vmatprep.subr.bf16.mxu0 0
      %702 = vmatpush1.bf16.msra.mxu0 0
      %703 = vmatprep.subr.bf16.mxu0 0
      %704 = vmatpush1.bf16.msra.mxu0 0
      %705 = vmatprep.subr.bf16.mxu0 0
      %706 = vmatpush1.bf16.msra.mxu0 0
      %707 = vmatprep.subr.bf16.mxu0 0
      %708 = vmatpush1.bf16.msra.mxu0 0
      %709 = vmatprep.subr.bf16.mxu0 0
      %710 = vmatpush1.bf16.msra.mxu0 0
      %711 = vmatprep.subr.bf16.mxu0 0
      %712 = vmatpush1.bf16.msra.mxu0 0
      %713 = vmatprep.subr.bf16.mxu0 0
      %714 = vmatpush1.bf16.msra.mxu0 0
      %715 = vmatprep.subr.bf16.mxu0 0
      %716 = vmatpush1.bf16.msra.mxu0 0
      %717 = vmatprep.subr.bf16.mxu0 0
      %718 = vmatpush1.bf16.msra.mxu0 0
      %719 = vmatprep.mubr.bf16.mxu0 0
      %720 = vmatmul.mubr.bf16.gmra.mrb[0].mxu0 %v679
      %v721 = vpop.f32.mrb[0].mxu0
      %v722 = vadd.f32 0.0, %v721
      %v723 = vpop.f32.mrb[0].mxu0
      %v724 = vadd.f32 0.0, %v723
      %v725 = vpop.f32.mrb[0].mxu0
      %v726 = vpop.f32.mrb[0].mxu0
      %727 = vdwg.mxu0
      %v728 = vadd.f32 %v668, %v722
      %v729 = vadd.f32 %v669, %v724
      %v730 = vld [vmem:[#allocation2 + $0x4] sm:$0xff]
      %v731 = vld [vmem:[#allocation2 + $0xc] sm:$0xf]
      %732 = vrot.lane.b32.xlu0 %v507, 1
      %v733 = vpop.permute.xlu0 %732
      %v734 = vrot.slane %v733, 4
      %v735 = vsel %vm615, %v734, %v733
      %v738 = vmul.bf16 %v730, %v735
      %v739 = vmul.bf16 %v731, %v734
      %s740 = scalar_lea.vmem %s1, 10
      %v741 = vld [vmem:[%s740] sm:$0x3]
      %v744 = vunpack.c.l.b16 %v738
      %v745 = vunpack.c.h.b16 %v738
      %v746 = vunpack.c.l.b16 %v739
      %v747 = vpack.c.b16 %v744, %v744
      %v748 = vpack.c.b16 %v745, %v745
      %v749 = vpack.c.b16 %v746, %v746
      %750 = vrot.lane.b32.xlu0 %v747, 127
      %v751 = vpop.permute.xlu0 %750
      %752 = vrot.lane.b32.xlu0 %v748, 127
      %v753 = vpop.permute.xlu0 %752
      %754 = vrot.lane.b32.xlu0 %v749, 127
      %v755 = vpop.permute.xlu0 %754
      %v756 = vsel %vm593, %v751, %v753
      %v757 = vsel %vm593, %v753, %v755
      %v759 = vsel %vm370, %v741, 0
      %v762 = vsel %vm374, %v756, 0
      %v765 = vsel %vm374, %v757, 0
      %767 = vmatprep.subr.bf16.mxu0 %v765
      %768 = vmatpush1.bf16.msra.mxu0 %v762
      %769 = vmatprep.subr.bf16.mxu0 0
      %770 = vmatpush1.bf16.msra.mxu0 0
      %771 = vmatprep.subr.bf16.mxu0 0
      %772 = vmatpush1.bf16.msra.mxu0 0
      %773 = vmatprep.subr.bf16.mxu0 0
      %774 = vmatpush1.bf16.msra.mxu0 0
      %775 = vmatprep.subr.bf16.mxu0 0
      %776 = vmatpush1.bf16.msra.mxu0 0
      %777 = vmatprep.subr.bf16.mxu0 0
      %778 = vmatpush1.bf16.msra.mxu0 0
      %779 = vmatprep.subr.bf16.mxu0 0
      %780 = vmatpush1.bf16.msra.mxu0 0
      %781 = vmatprep.subr.bf16.mxu0 0
      %782 = vmatpush1.bf16.msra.mxu0 0
      %783 = vmatprep.subr.bf16.mxu0 0
      %784 = vmatpush1.bf16.msra.mxu0 0
      %785 = vmatprep.subr.bf16.mxu0 0
      %786 = vmatpush1.bf16.msra.mxu0 0
      %787 = vmatprep.subr.bf16.mxu0 0
      %788 = vmatpush1.bf16.msra.mxu0 0
      %789 = vmatprep.subr.bf16.mxu0 0
      %790 = vmatpush1.bf16.msra.mxu0 0
      %791 = vmatprep.subr.bf16.mxu0 0
      %792 = vmatpush1.bf16.msra.mxu0 0
      %793 = vmatprep.subr.bf16.mxu0 0
      %794 = vmatpush1.bf16.msra.mxu0 0
      %795 = vmatprep.subr.bf16.mxu0 0
      %796 = vmatpush1.bf16.msra.mxu0 0
      %797 = vmatprep.subr.bf16.mxu0 0
      %798 = vmatpush1.bf16.msra.mxu0 0
      %799 = vmatprep.mubr.bf16.mxu0 0
      %800 = vmatmul.mubr.bf16.gmra.mrb[0].mxu0 %v759
      %v801 = vpop.f32.mrb[0].mxu0
      %v802 = vadd.f32 0.0, %v801
      %v803 = vpop.f32.mrb[0].mxu0
      %v804 = vadd.f32 0.0, %v803
      %v805 = vpop.f32.mrb[0].mxu0
      %v806 = vpop.f32.mrb[0].mxu0
      %807 = vdwg.mxu0
      %v808 = vadd.f32 %v728, %v802
      %v809 = vadd.f32 %v729, %v804
      %810 = vrot.lane.b32.xlu0 %v340, 15
      %v811 = vpop.permute.xlu0 %810
      %v812 = vrot.slane %v811, 4
      %v813 = vsel %vm533, %v812, %v811
      %v816 = vmul.bf16 %v730, %v813
      %v817 = vmul.bf16 %v731, %v812
      %s818 = scalar_lea.vmem %s1, 12
      %v819 = vld [vmem:[%s818] sm:$0x3]
      %v822 = vunpack.c.l.b16 %v816
      %v823 = vunpack.c.h.b16 %v816
      %v824 = vunpack.c.l.b16 %v817
      %v825 = vpack.c.b16 %v822, %v822
      %v826 = vpack.c.b16 %v823, %v823
      %v827 = vpack.c.b16 %v824, %v824
      %828 = vrot.lane.b32.xlu0 %v825, 113
      %v829 = vpop.permute.xlu0 %828
      %830 = vrot.lane.b32.xlu0 %v826, 113
      %v831 = vpop.permute.xlu0 %830
      %832 = vrot.lane.b32.xlu0 %v827, 113
      %v833 = vpop.permute.xlu0 %832
      %v834 = vsel %vm511, %v829, %v831
      %v835 = vsel %vm511, %v831, %v833
      %v837 = vsel %vm370, %v819, 0
      %v840 = vsel %vm374, %v834, 0
      %v843 = vsel %vm374, %v835, 0
      %845 = vmatprep.subr.bf16.mxu0 %v843
      %846 = vmatpush1.bf16.msra.mxu0 %v840
      %847 = vmatprep.subr.bf16.mxu0 0
      %848 = vmatpush1.bf16.msra.mxu0 0
      %849 = vmatprep.subr.bf16.mxu0 0
      %850 = vmatpush1.bf16.msra.mxu0 0
      %851 = vmatprep.subr.bf16.mxu0 0
      %852 = vmatpush1.bf16.msra.mxu0 0
      %853 = vmatprep.subr.bf16.mxu0 0
      %854 = vmatpush1.bf16.msra.mxu0 0
      %855 = vmatprep.subr.bf16.mxu0 0
      %856 = vmatpush1.bf16.msra.mxu0 0
      %857 = vmatprep.subr.bf16.mxu0 0
      %858 = vmatpush1.bf16.msra.mxu0 0
      %859 = vmatprep.subr.bf16.mxu0 0
      %860 = vmatpush1.bf16.msra.mxu0 0
      %861 = vmatprep.subr.bf16.mxu0 0
      %862 = vmatpush1.bf16.msra.mxu0 0
      %863 = vmatprep.subr.bf16.mxu0 0
      %864 = vmatpush1.bf16.msra.mxu0 0
      %865 = vmatprep.subr.bf16.mxu0 0
      %866 = vmatpush1.bf16.msra.mxu0 0
      %867 = vmatprep.subr.bf16.mxu0 0
      %868 = vmatpush1.bf16.msra.mxu0 0
      %869 = vmatprep.subr.bf16.mxu0 0
      %870 = vmatpush1.bf16.msra.mxu0 0
      %871 = vmatprep.subr.bf16.mxu0 0
      %872 = vmatpush1.bf16.msra.mxu0 0
      %873 = vmatprep.subr.bf16.mxu0 0
      %874 = vmatpush1.bf16.msra.mxu0 0
      %875 = vmatprep.subr.bf16.mxu0 0
      %876 = vmatpush1.bf16.msra.mxu0 0
      %877 = vmatprep.mubr.bf16.mxu0 0
      %878 = vmatmul.mubr.bf16.gmra.mrb[0].mxu0 %v837
      %v879 = vpop.f32.mrb[0].mxu0
      %v880 = vadd.f32 0.0, %v879
      %v881 = vpop.f32.mrb[0].mxu0
      %v882 = vadd.f32 0.0, %v881
      %v883 = vpop.f32.mrb[0].mxu0
      %v884 = vpop.f32.mrb[0].mxu0
      %885 = vdwg.mxu0
      %v886 = vadd.f32 %v808, %v880
      %v887 = vadd.f32 %v809, %v882
      %s888 = scalar_lea.vmem %s1, 14
      %v889 = vld [vmem:[%s888] sm:$0x3]
      %v892 = vunpack.c.l.b16 %v730
      %v893 = vunpack.c.h.b16 %v730
      %v894 = vunpack.c.l.b16 %v731
      %v895 = vpack.c.b16 %v892, %v892
      %v896 = vpack.c.b16 %v893, %v893
      %v897 = vpack.c.b16 %v894, %v894
      %898 = vrot.lane.b32.xlu0 %v895, 112
      %v899 = vpop.permute.xlu0 %898
      %900 = vrot.lane.b32.xlu0 %v896, 112
      %v901 = vpop.permute.xlu0 %900
      %902 = vrot.lane.b32.xlu0 %v897, 112
      %v903 = vpop.permute.xlu0 %902
      %vm904 = vcmask 916480
      %v905 = vsel %vm904, %v899, %v901
      %v906 = vsel %vm904, %v901, %v903
      %v908 = vsel %vm370, %v889, 0
      %v911 = vsel %vm374, %v905, 0
      %v914 = vsel %vm374, %v906, 0
      %916 = vmatprep.subr.bf16.mxu0 %v914
      %917 = vmatpush1.bf16.msra.mxu0 %v911
      %918 = vmatprep.subr.bf16.mxu0 0
      %919 = vmatpush1.bf16.msra.mxu0 0
      %920 = vmatprep.subr.bf16.mxu0 0
      %921 = vmatpush1.bf16.msra.mxu0 0
      %922 = vmatprep.subr.bf16.mxu0 0
      %923 = vmatpush1.bf16.msra.mxu0 0
      %924 = vmatprep.subr.bf16.mxu0 0
      %925 = vmatpush1.bf16.msra.mxu0 0
      %926 = vmatprep.subr.bf16.mxu0 0
      %927 = vmatpush1.bf16.msra.mxu0 0
      %928 = vmatprep.subr.bf16.mxu0 0
      %929 = vmatpush1.bf16.msra.mxu0 0
      %930 = vmatprep.subr.bf16.mxu0 0
      %931 = vmatpush1.bf16.msra.mxu0 0
      %932 = vmatprep.subr.bf16.mxu0 0
      %933 = vmatpush1.bf16.msra.mxu0 0
      %934 = vmatprep.subr.bf16.mxu0 0
      %935 = vmatpush1.bf16.msra.mxu0 0
      %936 = vmatprep.subr.bf16.mxu0 0
      %937 = vmatpush1.bf16.msra.mxu0 0
      %938 = vmatprep.subr.bf16.mxu0 0
      %939 = vmatpush1.bf16.msra.mxu0 0
      %940 = vmatprep.subr.bf16.mxu0 0
      %941 = vmatpush1.bf16.msra.mxu0 0
      %942 = vmatprep.subr.bf16.mxu0 0
      %943 = vmatpush1.bf16.msra.mxu0 0
      %944 = vmatprep.subr.bf16.mxu0 0
      %945 = vmatpush1.bf16.msra.mxu0 0
      %946 = vmatprep.subr.bf16.mxu0 0
      %947 = vmatpush1.bf16.msra.mxu0 0
      %948 = vmatprep.mubr.bf16.mxu0 0
      %949 = vmatmul.mubr.bf16.gmra.mrb[0].mxu0 %v908
      %v950 = vpop.f32.mrb[0].mxu0
      %v951 = vadd.f32 0.0, %v950
      %v952 = vpop.f32.mrb[0].mxu0
      %v953 = vadd.f32 0.0, %v952
      %v954 = vpop.f32.mrb[0].mxu0
      %v955 = vpop.f32.mrb[0].mxu0
      %956 = vdwg.mxu0
      %v957 = vadd.f32 %v886, %v951
      %v958 = vadd.f32 %v887, %v953
      %959 = vrot.lane.b32.xlu0 %v507, 17
      %v960 = vpop.permute.xlu0 %959
      %v961 = vrot.slane %v960, 4
      %v962 = vsel %vm436, %v961, %v960
      %v965 = vmul.bf16 %v730, %v962
      %v966 = vmul.bf16 %v731, %v961
      %s967 = scalar_lea.vmem %s1, 16
      %v968 = vld [vmem:[%s967] sm:$0x3]
      %v971 = vunpack.c.l.b16 %v965
      %v972 = vunpack.c.h.b16 %v965
      %v973 = vunpack.c.l.b16 %v966
      %v974 = vpack.c.b16 %v971, %v971
      %v975 = vpack.c.b16 %v972, %v972
      %v976 = vpack.c.b16 %v973, %v973
      %977 = vrot.lane.b32.xlu0 %v974, 111
      %v978 = vpop.permute.xlu0 %977
      %979 = vrot.lane.b32.xlu0 %v975, 111
      %v980 = vpop.permute.xlu0 %979
      %981 = vrot.lane.b32.xlu0 %v976, 111
      %v982 = vpop.permute.xlu0 %981
      %v983 = vsel %vm344, %v978, %v980
      %v984 = vsel %vm344, %v980, %v982
      %v986 = vsel %vm370, %v968, 0
      %v989 = vsel %vm374, %v983, 0
      %v992 = vsel %vm374, %v984, 0
      %994 = vmatprep.subr.bf16.mxu0 %v992
      %995 = vmatpush1.bf16.msra.mxu0 %v989
      %996 = vmatprep.subr.bf16.mxu0 0
      %997 = vmatpush1.bf16.msra.mxu0 0
      %998 = vmatprep.subr.bf16.mxu0 0
      %999 = vmatpush1.bf16.msra.mxu0 0
      %1000 = vmatprep.subr.bf16.mxu0 0
      %1001 = vmatpush1.bf16.msra.mxu0 0
      %1002 = vmatprep.subr.bf16.mxu0 0
      %1003 = vmatpush1.bf16.msra.mxu0 0
      %1004 = vmatprep.subr.bf16.mxu0 0
      %1005 = vmatpush1.bf16.msra.mxu0 0
      %1006 = vmatprep.subr.bf16.mxu0 0
      %1007 = vmatpush1.bf16.msra.mxu0 0
      %1008 = vmatprep.subr.bf16.mxu0 0
      %1009 = vmatpush1.bf16.msra.mxu0 0
      %1010 = vmatprep.subr.bf16.mxu0 0
      %1011 = vmatpush1.bf16.msra.mxu0 0
      %1012 = vmatprep.subr.bf16.mxu0 0
      %1013 = vmatpush1.bf16.msra.mxu0 0
      %1014 = vmatprep.subr.bf16.mxu0 0
      %1015 = vmatpush1.bf16.msra.mxu0 0
      %1016 = vmatprep.subr.bf16.mxu0 0
      %1017 = vmatpush1.bf16.msra.mxu0 0
      %1018 = vmatprep.subr.bf16.mxu0 0
      %1019 = vmatpush1.bf16.msra.mxu0 0
      %1020 = vmatprep.subr.bf16.mxu0 0
      %1021 = vmatpush1.bf16.msra.mxu0 0
      %1022 = vmatprep.subr.bf16.mxu0 0
      %1023 = vmatpush1.bf16.msra.mxu0 0
      %1024 = vmatprep.subr.bf16.mxu0 0
      %1025 = vmatpush1.bf16.msra.mxu0 0
      %1026 = vmatprep.mubr.bf16.mxu0 0
      %1027 = vmatmul.mubr.bf16.gmra.mrb[0].mxu0 %v986
      %v1028 = vpop.f32.mrb[0].mxu0
      %v1029 = vadd.f32 0.0, %v1028
      %v1030 = vpop.f32.mrb[0].mxu0
      %v1031 = vadd.f32 0.0, %v1030
      %v1032 = vpop.f32.mrb[0].mxu0
      %v1033 = vpop.f32.mrb[0].mxu0
      %1034 = vdwg.mxu0
      %v1035 = vadd.f32 %v957, %v1029
      %v1036 = vadd.f32 %v958, %v1031
      %v1037 = vpack.c.bf16 %v1035, %v1035
      %v1038 = vpack.c.bf16 %v1036, %v1036
      %v1041 = vcombine.low %v1037, %v1038
      %v1043 = vunpack.c.l.s4 1983009808
      %v1044 = vunpack.c.0.s8 %v1043
      %v1045 = vlaneseq
      %v1046 = vshrl.u32 %v1045, 7
      %v1047 = vsub.s32 %v1044, %v1046
      %v1048 = vrot.slane %v1041, %v1047
      %1050 = vst [vmem:[%s258] sm:$0xf] %v1048
      %v1051 = vsel %vm374, %v1035, 0.0
      %v1052 = vsel %vm374, %v1036, 0.0
      %v1053 = vadd.f32 %v1051, %v1052
      %1054 = vadd.xlane.f32.xlu0 %v1053
      %v1055 = vpop.xlane.xlu0 %1054
      %v1056 = vmul.f32 %v1035, %v1035
      %v1057 = vmul.f32 %v1036, %v1036
      %v1058 = vsel %vm374, %v1056, 0.0
      %v1059 = vsel %vm374, %v1057, 0.0
      %v1060 = vadd.f32 %v1058, %v1059
      %1061 = vadd.xlane.f32.xlu0 %v1060
      %v1062 = vpop.xlane.xlu0 %1061
      %vm1063 = vcmask 7168
      %v1064 = vsel %vm1063, %v1055, %v1062
      %vm1065 = vcmask 11264
      %1066 = vst.msk [vmem:[%s262] sm:$0xf] %vm1065, %v1064
      %p1067 = scmp.lt.s32.totalorder %s18, 1
      %s1068 = scalar_select %p1067, %s18, 1
      %s1069 = smul.addr %s1068, 2
      %s1070 = smul.addr %s1069, 2
      %s1071 = scalar_lea.vmem %s5, %s1070
      %p1072 = scmp.lt.s32.totalorder %s18, 1
      %s1073 = scalar_select %p1072, %s18, 1
      %s1074 = smul.addr %s1073, 4
      %s1075 = scalar_lea.vmem %s6, %s1074
      // Predicated region
      $region41: #{denoise_forward.4} parent=39 // pred_check
        %p1076 = pneg %p146
      $region42: #{denoise_forward.4} parent=39 // pred_check_branch
        %1078 = sbr.rel (%p1076) target = $region44
      $region43: #{denoise_forward.4} parent=39 // pred_region
        _
      $region44: #{denoise_forward.4} parent=39 // pred_fallthru
        _
      // Predicated region
      $region45: #{denoise_forward.4} parent=39 // pred_check
        %p1079 = pneg %p172
      $region46: #{denoise_forward.4} parent=39 // pred_check_branch
        %1081 = sbr.rel (%p1079) target = $region48
      $region47: #{denoise_forward.4} parent=39 // pred_region
        _
      $region48: #{denoise_forward.4} parent=39 // pred_fallthru
        _
    $region40: #{denoise_forward.4} parent=5 // pred_fallthru
      _
    %p1082 = scmp.le.s32.totalorder 2, %s13
    // Predicated region
    $region49: #{denoise_forward.4} parent=5 // pred_check
      %p1083 = pneg %p1082
    $region50: #{denoise_forward.4} parent=5 // pred_check_branch
      %1085 = sbr.rel (%p1083) target = $region52
    $region51: #{denoise_forward.4} parent=5 // pred_region
      %s1086 = ssub.s32 %s13, 2
      // Predicated region
      $region53: #{denoise_forward.4} parent=51 // pred_check
        %p1087 = pneg %p152
      $region54: #{denoise_forward.4} parent=51 // pred_check_branch
        %1089 = sbr.rel (%p1087) target = $region56
      $region55: #{denoise_forward.4} parent=51 // pred_region
        %p1090 = scmp.lt.s32.totalorder %s19, 1
        %s1091 = scalar_select %p1090, %s19, 1
        %s1092 = smul.addr %s1091, 2
        %s1093 = smul.addr %s1092, 2
        %s1094 = scalar_lea.vmem %s5, %s1093
      $region56: #{denoise_forward.4} parent=51 // pred_fallthru
        _
      // Predicated region
      $region57: #{denoise_forward.4} parent=51 // pred_check
        %p1095 = pneg %p178
      $region58: #{denoise_forward.4} parent=51 // pred_check_branch
        %1097 = sbr.rel (%p1095) target = $region60
      $region59: #{denoise_forward.4} parent=51 // pred_region
        %p1098 = scmp.lt.s32.totalorder %s19, 1
        %s1099 = scalar_select %p1098, %s19, 1
        %s1100 = smul.addr %s1099, 4
        %s1101 = scalar_lea.vmem %s6, %s1100
      $region60: #{denoise_forward.4} parent=51 // pred_fallthru
        _
    $region52: #{denoise_forward.4} parent=5 // pred_fallthru
      _
  $region6: #{denoise_forward.4} parent=0 // loop_footer
    %s17 = sadd.s32 1, %s13
  $region7: #{denoise_forward.4} parent=0 // loop_footer_branch
    %12 = sbr.rel target = $region3
  $region8: #{denoise_forward.4} parent=0 // loop_exit
    _

// kernel: denoise_forward.3
$region0: #{denoise_forward.3}
  #allocation0 [shape = 'u32[]', space=smem, size = 0x4, offset = 0x4, fixed_abs, tag = 'smem constant byte address 0x4 - core index']
  #allocation1 [shape = 'u32[144,128]{1,0:T(1,128)}', space=vmem, size = 0x12000, scoped, tag = 'internal scratch']
  #allocation2 [shape = 'bf16[4,512]{1,0:T(4,128)(2,1)}', space=vmem, size = 0x1000, scoped, tag = 'scratch operand']
  %s0 = inlined_call_operand.vmem [shape: f32[2,4,256], index: 0, kind: input, shape index: {}]
  %s1 = inlined_call_operand.vmem [shape: bf16[9,8,4], index: 1, kind: input, shape index: {}]
  %s2 = inlined_call_operand.vmem [shape: bf16[2,256], index: 2, kind: input, shape index: {}]
  %s3 = inlined_call_operand.vmem [shape: bf16[2,8,256], index: 3, kind: output, shape index: {0}]
  %s4 = inlined_call_operand.vmem [shape: f32[2,8,2], index: 4, kind: output, shape index: {1}]
  %5 = xla_tuple %s3, %s4
  %s6 = sld [smem:[#allocation0]]
  $region53: #{denoise_forward.3} parent=0
    _
  %s8 = ssub.s32 1, %s6
  %s9 = scalar_select 0, %s8, %s6
  loop: start=0, step=1, limit=4
  $region2: #{denoise_forward.3} parent=0 // loop_pre_header
    _
  $region3: #{denoise_forward.3} parent=0 // loop_header
    %s11 = sphi 0, %s15
    %p12 = scmp.ge.s32.totalorder %s11, 4
    %s21 = sphi 0, %s23
    %s24 = sphi 0, %s21
    %s25 = sphi 0, %s24
    %s41 = sphi 0, %s25
    %s45 = sphi 0, %s45
    %s47 = sphi 0, %s45
    %s48 = sphi 0, %s47
    %s62 = sphi 0, %s48
    %s66 = sphi 0, %s66
    %s68 = sphi 0, %s66
    %s69 = sphi 0, %s68
    %s83 = sphi 0, %s69
    %s89 = sphi 0, %s91
    %s92 = sphi 0, %s89
    %s93 = sphi 0, %s92
    %s109 = sphi 0, %s93
    %s115 = sphi 0, %s117
    %s118 = sphi 0, %s115
    %s119 = sphi 0, %s118
    %s135 = sphi 0, %s119
  $region4: #{denoise_forward.3} parent=0 // loop_header_branch
    %14 = sbr.rel (%p12) target = $region8
  $region5: #{denoise_forward.3} parent=0 // loop_body
    %s16 = ssub.s32 %s11, 1
    %s17 = ssub.s32 %s11, 2
    %s18 = sadd.s32 %s11, 1
    %s19 = ssub.s32 %s11, %s18
    %p20 = scmp.eq.s32.totalorder %s19, 0
    %s22 = sadd.s32 %s21, 1
    %s23 = scalar_select %p20, %s21, %s22
    %p26 = pneg %p20
    %p27 = scmp.eq.s32.totalorder %s11, 1
    %p28 = por %p26, %p27
    %p29 = scmp.ne.s32.totalorder %s21, %s24
    %p30 = scmp.eq.s32.totalorder %s11, 0
    %p31 = por %p29, %p30
    %p32 = scmp.ne.s32.totalorder %s21, %s24
    %p33 = scmp.eq.s32.totalorder %s16, 1
    %p34 = por %p32, %p33
    %p35 = scmp.ne.s32.totalorder %s24, %s25
    %p36 = scmp.eq.s32.totalorder %s16, 0
    %p37 = por %p35, %p36
    %p38 = scmp.ne.s32.totalorder %s24, %s25
    %p39 = scmp.eq.s32.totalorder %s17, 1
    %p40 = por %p38, %p39
    %p42 = scmp.ne.s32.totalorder %s25, %s41
    %p43 = scmp.eq.s32.totalorder %s17, 0
    %p44 = por %p42, %p43
    %s46 = sadd.s32 %s45, 1
    %p49 = scmp.eq.s32.totalorder %s11, 1
    %p50 = scmp.ne.s32.totalorder %s45, %s47
    %p51 = scmp.eq.s32.totalorder %s11, 0
    %p52 = por %p50, %p51
    %p53 = scmp.ne.s32.totalorder %s45, %s47
    %p54 = scmp.eq.s32.totalorder %s16, 1
    %p55 = por %p53, %p54
    %p56 = scmp.ne.s32.totalorder %s47, %s48
    %p57 = scmp.eq.s32.totalorder %s16, 0
    %p58 = por %p56, %p57
    %p59 = scmp.ne.s32.totalorder %s47, %s48
    %p60 = scmp.eq.s32.totalorder %s17, 1
    %p61 = por %p59, %p60
    %p63 = scmp.ne.s32.totalorder %s48, %s62
    %p64 = scmp.eq.s32.totalorder %s17, 0
    %p65 = por %p63, %p64
    %s67 = sadd.s32 %s66, 1
    %p70 = scmp.eq.s32.totalorder %s11, 1
    %p71 = scmp.ne.s32.totalorder %s66, %s68
    %p72 = scmp.eq.s32.totalorder %s11, 0
    %p73 = por %p71, %p72
    %p74 = scmp.ne.s32.totalorder %s66, %s68
    %p75 = scmp.eq.s32.totalorder %s16, 1
    %p76 = por %p74, %p75
    %p77 = scmp.ne.s32.totalorder %s68, %s69
    %p78 = scmp.eq.s32.totalorder %s16, 0
    %p79 = por %p77, %p78
    %p80 = scmp.ne.s32.totalorder %s68, %s69
    %p81 = scmp.eq.s32.totalorder %s17, 1
    %p82 = por %p80, %p81
    %p84 = scmp.ne.s32.totalorder %s69, %s83
    %p85 = scmp.eq.s32.totalorder %s17, 0
    %p86 = por %p84, %p85
    %s87 = ssub.s32 %s11, %s18
    %p88 = scmp.eq.s32.totalorder %s87, 0
    %s90 = sadd.s32 %s89, 1
    %s91 = scalar_select %p88, %s89, %s90
    %p94 = pneg %p88
    %p95 = scmp.eq.s32.totalorder %s11, 1
    %p96 = por %p94, %p95
    %p97 = scmp.ne.s32.totalorder %s89, %s92
    %p98 = scmp.eq.s32.totalorder %s11, 0
    %p99 = por %p97, %p98
    %p100 = scmp.ne.s32.totalorder %s89, %s92
    %p101 = scmp.eq.s32.totalorder %s16, 1
    %p102 = por %p100, %p101
    %p103 = scmp.ne.s32.totalorder %s92, %s93
    %p104 = scmp.eq.s32.totalorder %s16, 0
    %p105 = por %p103, %p104
    %p106 = scmp.ne.s32.totalorder %s92, %s93
    %p107 = scmp.eq.s32.totalorder %s17, 1
    %p108 = por %p106, %p107
    %p110 = scmp.ne.s32.totalorder %s93, %s109
    %p111 = scmp.eq.s32.totalorder %s17, 0
    %p112 = por %p110, %p111
    %s113 = ssub.s32 %s11, %s18
    %p114 = scmp.eq.s32.totalorder %s113, 0
    %s116 = sadd.s32 %s115, 1
    %s117 = scalar_select %p114, %s115, %s116
    %p120 = pneg %p114
    %p121 = scmp.eq.s32.totalorder %s11, 1
    %p122 = por %p120, %p121
    %p123 = scmp.ne.s32.totalorder %s115, %s118
    %p124 = scmp.eq.s32.totalorder %s11, 0
    %p125 = por %p123, %p124
    %p126 = scmp.ne.s32.totalorder %s115, %s118
    %p127 = scmp.eq.s32.totalorder %s16, 1
    %p128 = por %p126, %p127
    %p129 = scmp.ne.s32.totalorder %s118, %s119
    %p130 = scmp.eq.s32.totalorder %s16, 0
    %p131 = por %p129, %p130
    %p132 = scmp.ne.s32.totalorder %s118, %s119
    %p133 = scmp.eq.s32.totalorder %s17, 1
    %p134 = por %p132, %p133
    %p136 = scmp.ne.s32.totalorder %s119, %s135
    %p137 = scmp.eq.s32.totalorder %s17, 0
    %p138 = por %p136, %p137
    %p139 = scmp.le.s32.totalorder 1, %s11
    %p140 = scmp.lt.s32.totalorder %s11, 3
    %p141 = pnand %p139, %p140
    %p142 = pneg %p141
    // Predicated region
    $region9: #{denoise_forward.3} parent=5 // pred_check
      _
    $region10: #{denoise_forward.3} parent=5 // pred_check_branch
      %144 = sbr.rel (%p141) target = $region12
    $region11: #{denoise_forward.3} parent=5 // pred_region
      %s145 = ssub.s32 %s11, 1
      // Predicated region
      $region13: #{denoise_forward.3} parent=11 // pred_check
        %p146 = pneg %p58
      $region14: #{denoise_forward.3} parent=11 // pred_check_branch
        %148 = sbr.rel (%p146) target = $region16
      $region15: #{denoise_forward.3} parent=11 // pred_region
        _
      $region16: #{denoise_forward.3} parent=11 // pred_fallthru
        _
      // Predicated region
      $region17: #{denoise_forward.3} parent=11 // pred_check
        %p149 = pneg %p79
      $region18: #{denoise_forward.3} parent=11 // pred_check_branch
        %151 = sbr.rel (%p149) target = $region20
      $region19: #{denoise_forward.3} parent=11 // pred_region
        _
      $region20: #{denoise_forward.3} parent=11 // pred_fallthru
        _
    $region12: #{denoise_forward.3} parent=5 // pred_fallthru
      _
    %p152 = scmp.lt.s32.totalorder %s11, 2
    // Predicated region
    $region21: #{denoise_forward.3} parent=5 // pred_check
      %p153 = pneg %p152
    $region22: #{denoise_forward.3} parent=5 // pred_check_branch
      %155 = sbr.rel (%p153) target = $region24
    $region23: #{denoise_forward.3} parent=5 // pred_region
      // Predicated region
      $region25: #{denoise_forward.3} parent=23 // pred_check
        %p156 = pneg %p31
      $region26: #{denoise_forward.3} parent=23 // pred_check_branch
        %158 = sbr.rel (%p156) target = $region28
      $region27: #{denoise_forward.3} parent=23 // pred_region
        %p159 = scmp.lt.s32.totalorder %s11, 1
        %s160 = scalar_select %p159, %s11, 1
        %s161 = smul.addr %s160, 2
        %s162 = smul.addr %s161, 4
        %s163 = scalar_lea.vmem %s0, %s162
      $region28: #{denoise_forward.3} parent=23 // pred_fallthru
        _
    $region24: #{denoise_forward.3} parent=5 // pred_fallthru
      _
    %p164 = scmp.le.s32.totalorder 1, %s11
    %p165 = scmp.lt.s32.totalorder %s11, 3
    %p166 = pnand %p164, %p165
    %p167 = pneg %p166
    // Predicated region
    $region29: #{denoise_forward.3} parent=5 // pred_check
      _
    $region30: #{denoise_forward.3} parent=5 // pred_check_branch
      %169 = sbr.rel (%p166) target = $region32
    $region31: #{denoise_forward.3} parent=5 // pred_region
      %s170 = ssub.s32 %s11, 1
      %p171 = scmp.lt.s32.totalorder %s16, 1
      %s172 = scalar_select %p171, %s16, 1
      %s173 = smul.addr %s172, 2
      %s174 = smul.addr %s173, 4
      %s175 = scalar_lea.vmem %s0, %s174
      %p176 = pneg %p37
      %p177 = pneg %p34
      %p178 = pneg %p58
      %p179 = pneg %p55
      %p180 = pneg %p79
      %p181 = pneg %p76
      %p182 = pneg %p105
      %p183 = pneg %p102
      %p184 = scmp.lt.s32.totalorder %s16, 1
      %s185 = scalar_select %p184, %s16, 1
      %s186 = smul.addr %s185, 2
      %s187 = smul.addr %s186, 4
      %s188 = scalar_lea.vmem %s3, %s187
      %p189 = pneg %p131
      %p190 = pneg %p128
      %p191 = scmp.lt.s32.totalorder %s16, 1
      %s192 = scalar_select %p191, %s16, 1
      %s193 = smul.addr %s192, 8
      %s194 = scalar_lea.vmem %s4, %s193
      %p195 = scmp.lt.s32.totalorder %s16, 1
      %s196 = scalar_select %p195, %s16, 1
      %s197 = smul.addr %s196, 2
      %s198 = smul.addr %s197, 4
      %s199 = scalar_lea.vmem %s0, %s198
      %p200 = scmp.lt.s32.totalorder %s16, 1
      %s201 = scalar_select %p200, %s16, 1
      %s202 = smul.addr %s201, 2
      %s203 = smul.addr %s202, 4
      %s204 = scalar_lea.vmem %s3, %s203
      %p205 = scmp.lt.s32.totalorder %s16, 1
      %s206 = scalar_select %p205, %s16, 1
      %s207 = smul.addr %s206, 8
      %s208 = scalar_lea.vmem %s4, %s207
      %v210 = vld [vmem:[%s199] sm:$0xff]
      %211 = vst [vmem:[#allocation2] sm:$0x3] 0
      %212 = vst [vmem:[#allocation2 + $0x6] sm:$0x3] 0
      %v214 = vcombine.high %v210, %v210
      %v216 = vpack.c.bf16 %v210, %v210
      %v217 = vpack.c.bf16 %v214, %v214
      %v220 = vcombine.low %v216, %v217
      %v222 = vunpack.c.l.s4 1983009808
      %v223 = vunpack.c.0.s8 %v222
      %v224 = vlaneseq
      %v225 = vshrl.u32 %v224, 7
      %v226 = vsub.s32 %v223, %v225
      %v227 = vrot.slane %v220, %v226
      %229 = vst [vmem:[#allocation2 + $0x2] sm:$0xf] %v227
      %v230 = vld [vmem:[%s2] sm:$0x3]
      %v231 = vld [vmem:[#allocation2] sm:$0x3f]
      %v234 = vunpack.c.l.s4 1966171168
      %v235 = vunpack.c.0.s8 %v234
      %v236 = vlaneseq
      %v237 = vshrl.u32 %v236, 7
      %v238 = vsub.s32 %v235, %v237
      %v239 = vrot.slane %v230, %v238
      %v240 = vcombine.high %v239, %v239
      %v242 = vunpack.c.l.s4 1966171168
      %v243 = vunpack.c.0.s8 %v242
      %v244 = vlaneseq
      %v245 = vshrl.u32 %v244, 7
      %v246 = vsub.s32 %v243, %v245
      %v247 = vrot.slane %v239, %v246
      %v249 = vunpack.c.l.s4 1966171168
      %v250 = vunpack.c.0.s8 %v249
      %v251 = vlaneseq
      %v252 = vshrl.u32 %v251, 7
      %v253 = vsub.s32 %v250, %v252
      %v254 = vrot.slane %v240, %v253
      %v256 = vpack.i.b16 %v247, %v247
      %v258 = vlaneseq
      %v259 = vshrl.u32 %v258, 7
      %v260 = vsub.s32 0, %v259
      %v261 = vrot.slane %v256, %v260
      %v263 = vpack.i.b16 %v254, %v254
      %v265 = vlaneseq
      %v266 = vshrl.u32 %v265, 7
      %v267 = vsub.s32 0, %v266
      %v268 = vrot.slane %v263, %v267
      %v271 = vcombine.low %v261, %v268
      %v273 = vunpack.c.l.s4 1983009808
      %v274 = vunpack.c.0.s8 %v273
      %v275 = vlaneseq
      %v276 = vshrl.u32 %v275, 7
      %v277 = vsub.s32 %v274, %v276
      %v278 = vrot.slane %v271, %v277
      %279 = vrot.lane.b32.xlu0 %v278, 111
      %v280 = vpop.permute.xlu0 %279
      %v281 = vrot.slane %v280, 6
      %vm282 = vcmask 908288
      %v283 = vsel %vm282, %v281, %v280
      %v285 = vmul.bf16 %v231, %v283
      %v286 = vld [vmem:[%s1] sm:$0xf]
      %s287 = scalar_lea.vmem %s1, 4
      %v288 = vld [vmem:[%s287] sm:$0xf]
      %v290 = vcombine.high %v231, %v231
      %v292 = vunpack.c.l.s4 1983009808
      %v293 = vunpack.c.0.s8 %v292
      %v294 = vlaneseq
      %v295 = vshrl.u32 %v294, 7
      %v296 = vsub.s32 %v293, %v295
      %v297 = vrot.slane %v231, %v296
      %v299 = vunpack.c.l.s4 1983009808
      %v300 = vunpack.c.0.s8 %v299
      %v301 = vlaneseq
      %v302 = vshrl.u32 %v301, 7
      %v303 = vsub.s32 %v300, %v302
      %v304 = vrot.slane %v290, %v303
      %v305 = vcombine.high %v297, %v297
      %306 = vrot.lane.b32.xlu0 %v297, 16
      %v307 = vpop.permute.xlu0 %306
      %308 = vrot.lane.b32.xlu0 %v305, 16
      %v309 = vpop.permute.xlu0 %308
      %310 = vrot.lane.b32.xlu0 %v304, 16
      %v311 = vpop.permute.xlu0 %310
      %vm312 = vcmask 130048
      %v313 = vsel %vm312, %v307, %v309
      %v314 = vsel %vm312, %v309, %v311
      %vm315 = vcmask 31744
      %v317 = vsel %vm315, %v288, 0
      %vm319 = vcmask 1041408
      %v321 = vsel %vm319, %v313, 0
      %v324 = vsel %vm319, %v314, 0
      %326 = vmatprep.subr.bf16.mxu0 %v324
      %327 = vmatpush1.bf16.msra.mxu0 %v321
      %328 = vmatprep.subr.bf16.mxu0 0
      %329 = vmatpush1.bf16.msra.mxu0 0
      %330 = vmatprep.subr.bf16.mxu0 0
      %331 = vmatpush1.bf16.msra.mxu0 0
      %332 = vmatprep.subr.bf16.mxu0 0
      %333 = vmatpush1.bf16.msra.mxu0 0
      %334 = vmatprep.subr.bf16.mxu0 0
      %335 = vmatpush1.bf16.msra.mxu0 0
      %336 = vmatprep.subr.bf16.mxu0 0
      %337 = vmatpush1.bf16.msra.mxu0 0
      %338 = vmatprep.subr.bf16.mxu0 0
      %339 = vmatpush1.bf16.msra.mxu0 0
      %340 = vmatprep.subr.bf16.mxu0 0
      %341 = vmatpush1.bf16.msra.mxu0 0
      %342 = vmatprep.subr.bf16.mxu0 0
      %343 = vmatpush1.bf16.msra.mxu0 0
      %344 = vmatprep.subr.bf16.mxu0 0
      %345 = vmatpush1.bf16.msra.mxu0 0
      %346 = vmatprep.subr.bf16.mxu0 0
      %347 = vmatpush1.bf16.msra.mxu0 0
      %348 = vmatprep.subr.bf16.mxu0 0
      %349 = vmatpush1.bf16.msra.mxu0 0
      %350 = vmatprep.subr.bf16.mxu0 0
      %351 = vmatpush1.bf16.msra.mxu0 0
      %352 = vmatprep.subr.bf16.mxu0 0
      %353 = vmatpush1.bf16.msra.mxu0 0
      %354 = vmatprep.subr.bf16.mxu0 0
      %355 = vmatpush1.bf16.msra.mxu0 0
      %356 = vmatprep.subr.bf16.mxu0 0
      %357 = vmatpush1.bf16.msra.mxu0 0
      %358 = vmatprep.mubr.bf16.mxu0 0
      %359 = vmatmul.mubr.bf16.gmra.mrb[0].mxu0 %v317
      %v360 = vpop.f32.mrb[0].mxu0
      %v361 = vadd.f32 0.0, %v360
      %v362 = vpop.f32.mrb[0].mxu0
      %v363 = vadd.f32 0.0, %v362
      %v364 = vpop.f32.mrb[0].mxu0
      %v365 = vpop.f32.mrb[0].mxu0
      %366 = vdwg.mxu0
      %v368 = vcombine.high %v285, %v285
      %v370 = vunpack.c.l.s4 1983009808
      %v371 = vunpack.c.0.s8 %v370
      %v372 = vlaneseq
      %v373 = vshrl.u32 %v372, 7
      %v374 = vsub.s32 %v371, %v373
      %v375 = vrot.slane %v285, %v374
      %v377 = vunpack.c.l.s4 1983009808
      %v378 = vunpack.c.0.s8 %v377
      %v379 = vlaneseq
      %v380 = vshrl.u32 %v379, 7
      %v381 = vsub.s32 %v378, %v380
      %v382 = vrot.slane %v368, %v381
      %v383 = vcombine.high %v375, %v375
      %384 = vrot.lane.b32.xlu0 %v375, 17
      %v385 = vpop.permute.xlu0 %384
      %386 = vrot.lane.b32.xlu0 %v383, 17
      %v387 = vpop.permute.xlu0 %386
      %388 = vrot.lane.b32.xlu0 %v382, 17
      %v389 = vpop.permute.xlu0 %388
      %vm390 = vcmask 138240
      %v391 = vsel %vm390, %v385, %v387
      %v392 = vsel %vm390, %v387, %v389
      %v394 = vsel %vm315, %v286, 0
      %v397 = vsel %vm319, %v391, 0
      %v400 = vsel %vm319, %v392, 0
      %402 = vmatprep.subr.bf16.mxu0 %v400
      %403 = vmatpush1.bf16.msra.mxu0 %v397
      %404 = vmatprep.subr.bf16.mxu0 0
      %405 = vmatpush1.bf16.msra.mxu0 0
      %406 = vmatprep.subr.bf16.mxu0 0
      %407 = vmatpush1.bf16.msra.mxu0 0
      %408 = vmatprep.subr.bf16.mxu0 0
      %409 = vmatpush1.bf16.msra.mxu0 0
      %410 = vmatprep.subr.bf16.mxu0 0
      %411 = vmatpush1.bf16.msra.mxu0 0
      %412 = vmatprep.subr.bf16.mxu0 0
      %413 = vmatpush1.bf16.msra.mxu0 0
      %414 = vmatprep.subr.bf16.mxu0 0
      %415 = vmatpush1.bf16.msra.mxu0 0
      %416 = vmatprep.subr.bf16.mxu0 0
      %417 = vmatpush1.bf16.msra.mxu0 0
      %418 = vmatprep.subr.bf16.mxu0 0
      %419 = vmatpush1.bf16.msra.mxu0 0
      %420 = vmatprep.subr.bf16.mxu0 0
      %421 = vmatpush1.bf16.msra.mxu0 0
      %422 = vmatprep.subr.bf16.mxu0 0
      %423 = vmatpush1.bf16.msra.mxu0 0
      %424 = vmatprep.subr.bf16.mxu0 0
      %425 = vmatpush1.bf16.msra.mxu0 0
      %426 = vmatprep.subr.bf16.mxu0 0
      %427 = vmatpush1.bf16.msra.mxu0 0
      %428 = vmatprep.subr.bf16.mxu0 0
      %429 = vmatpush1.bf16.msra.mxu0 0
      %430 = vmatprep.subr.bf16.mxu0 0
      %431 = vmatpush1.bf16.msra.mxu0 0
      %432 = vmatprep.subr.bf16.mxu0 0
      %433 = vmatpush1.bf16.msra.mxu0 0
      %434 = vmatprep.mubr.bf16.mxu0 0
      %435 = vmatmul.mubr.bf16.gmra.mrb[0].mxu0 %v394
      %v436 = vpop.f32.mrb[0].mxu0
      %v437 = vadd.f32 %v361, %v436
      %v438 = vpop.f32.mrb[0].mxu0
      %v439 = vadd.f32 %v363, %v438
      %v440 = vpop.f32.mrb[0].mxu0
      %v441 = vpop.f32.mrb[0].mxu0
      %442 = vdwg.mxu0
      %v443 = vld [vmem:[#allocation2] sm:$0x3f]
      %v444 = vshrl.u32 %v247, 16
      %v445 = vpack.i.b16 %v444, %v444
      %v447 = vlaneseq
      %v448 = vshrl.u32 %v447, 7
      %v449 = vsub.s32 0, %v448
      %v450 = vrot.slane %v445, %v449
      %v451 = vshrl.u32 %v254, 16
      %v452 = vpack.i.b16 %v451, %v451
      %v454 = vlaneseq
      %v455 = vshrl.u32 %v454, 7
      %v456 = vsub.s32 0, %v455
      %v457 = vrot.slane %v452, %v456
      %v460 = vcombine.low %v450, %v457
      %v462 = vunpack.c.l.s4 1983009808
      %v463 = vunpack.c.0.s8 %v462
      %v464 = vlaneseq
      %v465 = vshrl.u32 %v464, 7
      %v466 = vsub.s32 %v463, %v465
      %v467 = vrot.slane %v460, %v466
      %468 = vrot.lane.b32.xlu0 %v467, 113
      %v469 = vpop.permute.xlu0 %468
      %v470 = vrot.slane %v469, 6
      %vm471 = vcmask 924672
      %v472 = vsel %vm471, %v470, %v469
      %v474 = vmul.bf16 %v443, %v472
      %s475 = scalar_lea.vmem %s1, 8
      %v476 = vld [vmem:[%s475] sm:$0xf]
      %v478 = vcombine.high %v474, %v474
      %v480 = vunpack.c.l.s4 1983009808
      %v481 = vunpack.c.0.s8 %v480
      %v482 = vlaneseq
      %v483 = vshrl.u32 %v482, 7
      %v484 = vsub.s32 %v481, %v483
      %v485 = vrot.slane %v474, %v484
      %v487 = vunpack.c.l.s4 1983009808
      %v488 = vunpack.c.0.s8 %v487
      %v489 = vlaneseq
      %v490 = vshrl.u32 %v489, 7
      %v491 = vsub.s32 %v488, %v490
      %v492 = vrot.slane %v478, %v491
      %v493 = vcombine.high %v485, %v485
      %494 = vrot.lane.b32.xlu0 %v485, 15
      %v495 = vpop.permute.xlu0 %494
      %496 = vrot.lane.b32.xlu0 %v493, 15
      %v497 = vpop.permute.xlu0 %496
      %498 = vrot.lane.b32.xlu0 %v492, 15
      %v499 = vpop.permute.xlu0 %498
      %vm500 = vcmask 121856
      %v501 = vsel %vm500, %v495, %v497
      %v502 = vsel %vm500, %v497, %v499
      %v504 = vsel %vm315, %v476, 0
      %v507 = vsel %vm319, %v501, 0
      %v510 = vsel %vm319, %v502, 0
      %512 = vmatprep.subr.bf16.mxu0 %v510
      %513 = vmatpush1.bf16.msra.mxu0 %v507
      %514 = vmatprep.subr.bf16.mxu0 0
      %515 = vmatpush1.bf16.msra.mxu0 0
      %516 = vmatprep.subr.bf16.mxu0 0
      %517 = vmatpush1.bf16.msra.mxu0 0
      %518 = vmatprep.subr.bf16.mxu0 0
      %519 = vmatpush1.bf16.msra.mxu0 0
      %520 = vmatprep.subr.bf16.mxu0 0
      %521 = vmatpush1.bf16.msra.mxu0 0
      %522 = vmatprep.subr.bf16.mxu0 0
      %523 = vmatpush1.bf16.msra.mxu0 0
      %524 = vmatprep.subr.bf16.mxu0 0
      %525 = vmatpush1.bf16.msra.mxu0 0
      %526 = vmatprep.subr.bf16.mxu0 0
      %527 = vmatpush1.bf16.msra.mxu0 0
      %528 = vmatprep.subr.bf16.mxu0 0
      %529 = vmatpush1.bf16.msra.mxu0 0
      %530 = vmatprep.subr.bf16.mxu0 0
      %531 = vmatpush1.bf16.msra.mxu0 0
      %532 = vmatprep.subr.bf16.mxu0 0
      %533 = vmatpush1.bf16.msra.mxu0 0
      %534 = vmatprep.subr.bf16.mxu0 0
      %535 = vmatpush1.bf16.msra.mxu0 0
      %536 = vmatprep.subr.bf16.mxu0 0
      %537 = vmatpush1.bf16.msra.mxu0 0
      %538 = vmatprep.subr.bf16.mxu0 0
      %539 = vmatpush1.bf16.msra.mxu0 0
      %540 = vmatprep.subr.bf16.mxu0 0
      %541 = vmatpush1.bf16.msra.mxu0 0
      %542 = vmatprep.subr.bf16.mxu0 0
      %543 = vmatpush1.bf16.msra.mxu0 0
      %544 = vmatprep.mubr.bf16.mxu0 0
      %545 = vmatmul.mubr.bf16.gmra.mrb[0].mxu0 %v504
      %v546 = vpop.f32.mrb[0].mxu0
      %v547 = vadd.f32 0.0, %v546
      %v548 = vpop.f32.mrb[0].mxu0
      %v549 = vadd.f32 0.0, %v548
      %v550 = vpop.f32.mrb[0].mxu0
      %v551 = vpop.f32.mrb[0].mxu0
      %552 = vdwg.mxu0
      %v553 = vadd.f32 %v437, %v547
      %v554 = vadd.f32 %v439, %v549
      %v555 = vld [vmem:[#allocation2] sm:$0x3f]
      %556 = vrot.lane.b32.xlu0 %v278, 127
      %v557 = vpop.permute.xlu0 %556
      %v558 = vrot.slane %v557, 6
      %vm559 = vcmask 1039360
      %v560 = vsel %vm559, %v558, %v557
      %v562 = vmul.bf16 %v555, %v560
      %s563 = scalar_lea.vmem %s1, 12
      %v564 = vld [vmem:[%s563] sm:$0xf]
      %v566 = vcombine.high %v562, %v562
      %v568 = vunpack.c.l.s4 1983009808
      %v569 = vunpack.c.0.s8 %v568
      %v570 = vlaneseq
      %v571 = vshrl.u32 %v570, 7
      %v572 = vsub.s32 %v569, %v571
      %v573 = vrot.slane %v562, %v572
      %v575 = vunpack.c.l.s4 1983009808
      %v576 = vunpack.c.0.s8 %v575
      %v577 = vlaneseq
      %v578 = vshrl.u32 %v577, 7
      %v579 = vsub.s32 %v576, %v578
      %v580 = vrot.slane %v566, %v579
      %v581 = vcombine.high %v573, %v573
      %582 = vrot.lane.b32.xlu0 %v573, 1
      %v583 = vpop.permute.xlu0 %582
      %584 = vrot.lane.b32.xlu0 %v581, 1
      %v585 = vpop.permute.xlu0 %584
      %586 = vrot.lane.b32.xlu0 %v580, 1
      %v587 = vpop.permute.xlu0 %586
      %vm588 = vcmask 7168
      %v589 = vsel %vm588, %v583, %v585
      %v590 = vsel %vm588, %v585, %v587
      %v592 = vsel %vm315, %v564, 0
      %v595 = vsel %vm319, %v589, 0
      %v598 = vsel %vm319, %v590, 0
      %600 = vmatprep.subr.bf16.mxu0 %v598
      %601 = vmatpush1.bf16.msra.mxu0 %v595
      %602 = vmatprep.subr.bf16.mxu0 0
      %603 = vmatpush1.bf16.msra.mxu0 0
      %604 = vmatprep.subr.bf16.mxu0 0
      %605 = vmatpush1.bf16.msra.mxu0 0
      %606 = vmatprep.subr.bf16.mxu0 0
      %607 = vmatpush1.bf16.msra.mxu0 0
      %608 = vmatprep.subr.bf16.mxu0 0
      %609 = vmatpush1.bf16.msra.mxu0 0
      %610 = vmatprep.subr.bf16.mxu0 0
      %611 = vmatpush1.bf16.msra.mxu0 0
      %612 = vmatprep.subr.bf16.mxu0 0
      %613 = vmatpush1.bf16.msra.mxu0 0
      %614 = vmatprep.subr.bf16.mxu0 0
      %615 = vmatpush1.bf16.msra.mxu0 0
      %616 = vmatprep.subr.bf16.mxu0 0
      %617 = vmatpush1.bf16.msra.mxu0 0
      %618 = vmatprep.subr.bf16.mxu0 0
      %619 = vmatpush1.bf16.msra.mxu0 0
      %620 = vmatprep.subr.bf16.mxu0 0
      %621 = vmatpush1.bf16.msra.mxu0 0
      %622 = vmatprep.subr.bf16.mxu0 0
      %623 = vmatpush1.bf16.msra.mxu0 0
      %624 = vmatprep.subr.bf16.mxu0 0
      %625 = vmatpush1.bf16.msra.mxu0 0
      %626 = vmatprep.subr.bf16.mxu0 0
      %627 = vmatpush1.bf16.msra.mxu0 0
      %628 = vmatprep.subr.bf16.mxu0 0
      %629 = vmatpush1.bf16.msra.mxu0 0
      %630 = vmatprep.subr.bf16.mxu0 0
      %631 = vmatpush1.bf16.msra.mxu0 0
      %632 = vmatprep.mubr.bf16.mxu0 0
      %633 = vmatmul.mubr.bf16.gmra.mrb[0].mxu0 %v592
      %v634 = vpop.f32.mrb[0].mxu0
      %v635 = vadd.f32 0.0, %v634
      %v636 = vpop.f32.mrb[0].mxu0
      %v637 = vadd.f32 0.0, %v636
      %v638 = vpop.f32.mrb[0].mxu0
      %v639 = vpop.f32.mrb[0].mxu0
      %640 = vdwg.mxu0
      %v641 = vadd.f32 %v553, %v635
      %v642 = vadd.f32 %v554, %v637
      %v643 = vld [vmem:[#allocation2 + $0x2] sm:$0xf]
      %s644 = scalar_lea.vmem %s1, 16
      %v645 = vld [vmem:[%s644] sm:$0xf]
      %v648 = vunpack.c.l.s4 1983009808
      %v649 = vunpack.c.0.s8 %v648
      %v650 = vlaneseq
      %v651 = vshrl.u32 %v650, 7
      %v652 = vsub.s32 %v649, %v651
      %v653 = vrot.slane %v643, %v652
      %v654 = vcombine.high %v653, %v653
      %v656 = vsel %vm315, %v645, 0
      %v659 = vsel %vm319, %v653, 0
      %v662 = vsel %vm319, %v654, 0
      %664 = vmatprep.subr.bf16.mxu0 %v662
      %665 = vmatpush1.bf16.msra.mxu0 %v659
      %666 = vmatprep.subr.bf16.mxu0 0
      %667 = vmatpush1.bf16.msra.mxu0 0
      %668 = vmatprep.subr.bf16.mxu0 0
      %669 = vmatpush1.bf16.msra.mxu0 0
      %670 = vmatprep.subr.bf16.mxu0 0
      %671 = vmatpush1.bf16.msra.mxu0 0
      %672 = vmatprep.subr.bf16.mxu0 0
      %673 = vmatpush1.bf16.msra.mxu0 0
      %674 = vmatprep.subr.bf16.mxu0 0
      %675 = vmatpush1.bf16.msra.mxu0 0
      %676 = vmatprep.subr.bf16.mxu0 0
      %677 = vmatpush1.bf16.msra.mxu0 0
      %678 = vmatprep.subr.bf16.mxu0 0
      %679 = vmatpush1.bf16.msra.mxu0 0
      %680 = vmatprep.subr.bf16.mxu0 0
      %681 = vmatpush1.bf16.msra.mxu0 0
      %682 = vmatprep.subr.bf16.mxu0 0
      %683 = vmatpush1.bf16.msra.mxu0 0
      %684 = vmatprep.subr.bf16.mxu0 0
      %685 = vmatpush1.bf16.msra.mxu0 0
      %686 = vmatprep.subr.bf16.mxu0 0
      %687 = vmatpush1.bf16.msra.mxu0 0
      %688 = vmatprep.subr.bf16.mxu0 0
      %689 = vmatpush1.bf16.msra.mxu0 0
      %690 = vmatprep.subr.bf16.mxu0 0
      %691 = vmatpush1.bf16.msra.mxu0 0
      %692 = vmatprep.subr.bf16.mxu0 0
      %693 = vmatpush1.bf16.msra.mxu0 0
      %694 = vmatprep.subr.bf16.mxu0 0
      %695 = vmatpush1.bf16.msra.mxu0 0
      %696 = vmatprep.mubr.bf16.mxu0 0
      %697 = vmatmul.mubr.bf16.gmra.mrb[0].mxu0 %v656
      %v698 = vpop.f32.mrb[0].mxu0
      %v699 = vadd.f32 0.0, %v698
      %v700 = vpop.f32.mrb[0].mxu0
      %v701 = vadd.f32 0.0, %v700
      %v702 = vpop.f32.mrb[0].mxu0
      %v703 = vpop.f32.mrb[0].mxu0
      %704 = vdwg.mxu0
      %v705 = vadd.f32 %v641, %v699
      %v706 = vadd.f32 %v642, %v701
      %v707 = vld [vmem:[#allocation2 + $0x2] sm:$0x3f]
      %708 = vrot.lane.b32.xlu0 %v467, 1
      %v709 = vpop.permute.xlu0 %708
      %v710 = vrot.slane %v709, 6
      %v711 = vsel %vm588, %v710, %v709
      %v713 = vmul.bf16 %v707, %v711
      %s714 = scalar_lea.vmem %s1, 20
      %v715 = vld [vmem:[%s714] sm:$0xf]
      %v717 = vcombine.high %v713, %v713
      %v719 = vunpack.c.l.s4 1983009808
      %v720 = vunpack.c.0.s8 %v719
      %v721 = vlaneseq
      %v722 = vshrl.u32 %v721, 7
      %v723 = vsub.s32 %v720, %v722
      %v724 = vrot.slane %v713, %v723
      %v726 = vunpack.c.l.s4 1983009808
      %v727 = vunpack.c.0.s8 %v726
      %v728 = vlaneseq
      %v729 = vshrl.u32 %v728, 7
      %v730 = vsub.s32 %v727, %v729
      %v731 = vrot.slane %v717, %v730
      %v732 = vcombine.high %v724, %v724
      %733 = vrot.lane.b32.xlu0 %v724, 127
      %v734 = vpop.permute.xlu0 %733
      %735 = vrot.lane.b32.xlu0 %v732, 127
      %v736 = vpop.permute.xlu0 %735
      %737 = vrot.lane.b32.xlu0 %v731, 127
      %v738 = vpop.permute.xlu0 %737
      %v739 = vsel %vm559, %v734, %v736
      %v740 = vsel %vm559, %v736, %v738
      %v742 = vsel %vm315, %v715, 0
      %v745 = vsel %vm319, %v739, 0
      %v748 = vsel %vm319, %v740, 0
      %750 = vmatprep.subr.bf16.mxu0 %v748
      %751 = vmatpush1.bf16.msra.mxu0 %v745
      %752 = vmatprep.subr.bf16.mxu0 0
      %753 = vmatpush1.bf16.msra.mxu0 0
      %754 = vmatprep.subr.bf16.mxu0 0
      %755 = vmatpush1.bf16.msra.mxu0 0
      %756 = vmatprep.subr.bf16.mxu0 0
      %757 = vmatpush1.bf16.msra.mxu0 0
      %758 = vmatprep.subr.bf16.mxu0 0
      %759 = vmatpush1.bf16.msra.mxu0 0
      %760 = vmatprep.subr.bf16.mxu0 0
      %761 = vmatpush1.bf16.msra.mxu0 0
      %762 = vmatprep.subr.bf16.mxu0 0
      %763 = vmatpush1.bf16.msra.mxu0 0
      %764 = vmatprep.subr.bf16.mxu0 0
      %765 = vmatpush1.bf16.msra.mxu0 0
      %766 = vmatprep.subr.bf16.mxu0 0
      %767 = vmatpush1.bf16.msra.mxu0 0
      %768 = vmatprep.subr.bf16.mxu0 0
      %769 = vmatpush1.bf16.msra.mxu0 0
      %770 = vmatprep.subr.bf16.mxu0 0
      %771 = vmatpush1.bf16.msra.mxu0 0
      %772 = vmatprep.subr.bf16.mxu0 0
      %773 = vmatpush1.bf16.msra.mxu0 0
      %774 = vmatprep.subr.bf16.mxu0 0
      %775 = vmatpush1.bf16.msra.mxu0 0
      %776 = vmatprep.subr.bf16.mxu0 0
      %777 = vmatpush1.bf16.msra.mxu0 0
      %778 = vmatprep.subr.bf16.mxu0 0
      %779 = vmatpush1.bf16.msra.mxu0 0
      %780 = vmatprep.subr.bf16.mxu0 0
      %781 = vmatpush1.bf16.msra.mxu0 0
      %782 = vmatprep.mubr.bf16.mxu0 0
      %783 = vmatmul.mubr.bf16.gmra.mrb[0].mxu0 %v742
      %v784 = vpop.f32.mrb[0].mxu0
      %v785 = vadd.f32 0.0, %v784
      %v786 = vpop.f32.mrb[0].mxu0
      %v787 = vadd.f32 0.0, %v786
      %v788 = vpop.f32.mrb[0].mxu0
      %v789 = vpop.f32.mrb[0].mxu0
      %790 = vdwg.mxu0
      %v791 = vadd.f32 %v705, %v785
      %v792 = vadd.f32 %v706, %v787
      %v793 = vld [vmem:[#allocation2 + $0x2] sm:$0x3f]
      %794 = vrot.lane.b32.xlu0 %v278, 15
      %v795 = vpop.permute.xlu0 %794
      %v796 = vrot.slane %v795, 6
      %v797 = vsel %vm500, %v796, %v795
      %v799 = vmul.bf16 %v793, %v797
      %s800 = scalar_lea.vmem %s1, 24
      %v801 = vld [vmem:[%s800] sm:$0xf]
      %v803 = vcombine.high %v799, %v799
      %v805 = vunpack.c.l.s4 1983009808
      %v806 = vunpack.c.0.s8 %v805
      %v807 = vlaneseq
      %v808 = vshrl.u32 %v807, 7
      %v809 = vsub.s32 %v806, %v808
      %v810 = vrot.slane %v799, %v809
      %v812 = vunpack.c.l.s4 1983009808
      %v813 = vunpack.c.0.s8 %v812
      %v814 = vlaneseq
      %v815 = vshrl.u32 %v814, 7
      %v816 = vsub.s32 %v813, %v815
      %v817 = vrot.slane %v803, %v816
      %v818 = vcombine.high %v810, %v810
      %819 = vrot.lane.b32.xlu0 %v810, 113
      %v820 = vpop.permute.xlu0 %819
      %821 = vrot.lane.b32.xlu0 %v818, 113
      %v822 = vpop.permute.xlu0 %821
      %823 = vrot.lane.b32.xlu0 %v817, 113
      %v824 = vpop.permute.xlu0 %823
      %v825 = vsel %vm471, %v820, %v822
      %v826 = vsel %vm471, %v822, %v824
      %v828 = vsel %vm315, %v801, 0
      %v831 = vsel %vm319, %v825, 0
      %v834 = vsel %vm319, %v826, 0
      %836 = vmatprep.subr.bf16.mxu0 %v834
      %837 = vmatpush1.bf16.msra.mxu0 %v831
      %838 = vmatprep.subr.bf16.mxu0 0
      %839 = vmatpush1.bf16.msra.mxu0 0
      %840 = vmatprep.subr.bf16.mxu0 0
      %841 = vmatpush1.bf16.msra.mxu0 0
      %842 = vmatprep.subr.bf16.mxu0 0
      %843 = vmatpush1.bf16.msra.mxu0 0
      %844 = vmatprep.subr.bf16.mxu0 0
      %845 = vmatpush1.bf16.msra.mxu0 0
      %846 = vmatprep.subr.bf16.mxu0 0
      %847 = vmatpush1.bf16.msra.mxu0 0
      %848 = vmatprep.subr.bf16.mxu0 0
      %849 = vmatpush1.bf16.msra.mxu0 0
      %850 = vmatprep.subr.bf16.mxu0 0
      %851 = vmatpush1.bf16.msra.mxu0 0
      %852 = vmatprep.subr.bf16.mxu0 0
      %853 = vmatpush1.bf16.msra.mxu0 0
      %854 = vmatprep.subr.bf16.mxu0 0
      %855 = vmatpush1.bf16.msra.mxu0 0
      %856 = vmatprep.subr.bf16.mxu0 0
      %857 = vmatpush1.bf16.msra.mxu0 0
      %858 = vmatprep.subr.bf16.mxu0 0
      %859 = vmatpush1.bf16.msra.mxu0 0
      %860 = vmatprep.subr.bf16.mxu0 0
      %861 = vmatpush1.bf16.msra.mxu0 0
      %862 = vmatprep.subr.bf16.mxu0 0
      %863 = vmatpush1.bf16.msra.mxu0 0
      %864 = vmatprep.subr.bf16.mxu0 0
      %865 = vmatpush1.bf16.msra.mxu0 0
      %866 = vmatprep.subr.bf16.mxu0 0
      %867 = vmatpush1.bf16.msra.mxu0 0
      %868 = vmatprep.mubr.bf16.mxu0 0
      %869 = vmatmul.mubr.bf16.gmra.mrb[0].mxu0 %v828
      %v870 = vpop.f32.mrb[0].mxu0
      %v871 = vadd.f32 0.0, %v870
      %v872 = vpop.f32.mrb[0].mxu0
      %v873 = vadd.f32 0.0, %v872
      %v874 = vpop.f32.mrb[0].mxu0
      %v875 = vpop.f32.mrb[0].mxu0
      %876 = vdwg.mxu0
      %v877 = vadd.f32 %v791, %v871
      %v878 = vadd.f32 %v792, %v873
      %v879 = vld [vmem:[#allocation2 + $0x2] sm:$0x3f]
      %s880 = scalar_lea.vmem %s1, 28
      %v881 = vld [vmem:[%s880] sm:$0xf]
      %v883 = vcombine.high %v879, %v879
      %v885 = vunpack.c.l.s4 1983009808
      %v886 = vunpack.c.0.s8 %v885
      %v887 = vlaneseq
      %v888 = vshrl.u32 %v887, 7
      %v889 = vsub.s32 %v886, %v888
      %v890 = vrot.slane %v879, %v889
      %v892 = vunpack.c.l.s4 1983009808
      %v893 = vunpack.c.0.s8 %v892
      %v894 = vlaneseq
      %v895 = vshrl.u32 %v894, 7
      %v896 = vsub.s32 %v893, %v895
      %v897 = vrot.slane %v883, %v896
      %v898 = vcombine.high %v890, %v890
      %899 = vrot.lane.b32.xlu0 %v890, 112
      %v900 = vpop.permute.xlu0 %899
      %901 = vrot.lane.b32.xlu0 %v898, 112
      %v902 = vpop.permute.xlu0 %901
      %903 = vrot.lane.b32.xlu0 %v897, 112
      %v904 = vpop.permute.xlu0 %903
      %vm905 = vcmask 916480
      %v906 = vsel %vm905, %v900, %v902
      %v907 = vsel %vm905, %v902, %v904
      %v909 = vsel %vm315, %v881, 0
      %v912 = vsel %vm319, %v906, 0
      %v915 = vsel %vm319, %v907, 0
      %917 = vmatprep.subr.bf16.mxu0 %v915
      %918 = vmatpush1.bf16.msra.mxu0 %v912
      %919 = vmatprep.subr.bf16.mxu0 0
      %920 = vmatpush1.bf16.msra.mxu0 0
      %921 = vmatprep.subr.bf16.mxu0 0
      %922 = vmatpush1.bf16.msra.mxu0 0
      %923 = vmatprep.subr.bf16.mxu0 0
      %924 = vmatpush1.bf16.msra.mxu0 0
      %925 = vmatprep.subr.bf16.mxu0 0
      %926 = vmatpush1.bf16.msra.mxu0 0
      %927 = vmatprep.subr.bf16.mxu0 0
      %928 = vmatpush1.bf16.msra.mxu0 0
      %929 = vmatprep.subr.bf16.mxu0 0
      %930 = vmatpush1.bf16.msra.mxu0 0
      %931 = vmatprep.subr.bf16.mxu0 0
      %932 = vmatpush1.bf16.msra.mxu0 0
      %933 = vmatprep.subr.bf16.mxu0 0
      %934 = vmatpush1.bf16.msra.mxu0 0
      %935 = vmatprep.subr.bf16.mxu0 0
      %936 = vmatpush1.bf16.msra.mxu0 0
      %937 = vmatprep.subr.bf16.mxu0 0
      %938 = vmatpush1.bf16.msra.mxu0 0
      %939 = vmatprep.subr.bf16.mxu0 0
      %940 = vmatpush1.bf16.msra.mxu0 0
      %941 = vmatprep.subr.bf16.mxu0 0
      %942 = vmatpush1.bf16.msra.mxu0 0
      %943 = vmatprep.subr.bf16.mxu0 0
      %944 = vmatpush1.bf16.msra.mxu0 0
      %945 = vmatprep.subr.bf16.mxu0 0
      %946 = vmatpush1.bf16.msra.mxu0 0
      %947 = vmatprep.subr.bf16.mxu0 0
      %948 = vmatpush1.bf16.msra.mxu0 0
      %949 = vmatprep.mubr.bf16.mxu0 0
      %950 = vmatmul.mubr.bf16.gmra.mrb[0].mxu0 %v909
      %v951 = vpop.f32.mrb[0].mxu0
      %v952 = vadd.f32 0.0, %v951
      %v953 = vpop.f32.mrb[0].mxu0
      %v954 = vadd.f32 0.0, %v953
      %v955 = vpop.f32.mrb[0].mxu0
      %v956 = vpop.f32.mrb[0].mxu0
      %957 = vdwg.mxu0
      %v958 = vadd.f32 %v877, %v952
      %v959 = vadd.f32 %v878, %v954
      %v960 = vld [vmem:[#allocation2 + $0x2] sm:$0x3f]
      %961 = vrot.lane.b32.xlu0 %v467, 17
      %v962 = vpop.permute.xlu0 %961
      %v963 = vrot.slane %v962, 6
      %v964 = vsel %vm390, %v963, %v962
      %v966 = vmul.bf16 %v960, %v964
      %s967 = scalar_lea.vmem %s1, 32
      %v968 = vld [vmem:[%s967] sm:$0xf]
      %v970 = vcombine.high %v966, %v966
      %v972 = vunpack.c.l.s4 1983009808
      %v973 = vunpack.c.0.s8 %v972
      %v974 = vlaneseq
      %v975 = vshrl.u32 %v974, 7
      %v976 = vsub.s32 %v973, %v975
      %v977 = vrot.slane %v966, %v976
      %v979 = vunpack.c.l.s4 1983009808
      %v980 = vunpack.c.0.s8 %v979
      %v981 = vlaneseq
      %v982 = vshrl.u32 %v981, 7
      %v983 = vsub.s32 %v980, %v982
      %v984 = vrot.slane %v970, %v983
      %v985 = vcombine.high %v977, %v977
      %986 = vrot.lane.b32.xlu0 %v977, 111
      %v987 = vpop.permute.xlu0 %986
      %988 = vrot.lane.b32.xlu0 %v985, 111
      %v989 = vpop.permute.xlu0 %988
      %990 = vrot.lane.b32.xlu0 %v984, 111
      %v991 = vpop.permute.xlu0 %990
      %v992 = vsel %vm282, %v987, %v989
      %v993 = vsel %vm282, %v989, %v991
      %v995 = vsel %vm315, %v968, 0
      %v998 = vsel %vm319, %v992, 0
      %v1001 = vsel %vm319, %v993, 0
      %1003 = vmatprep.subr.bf16.mxu0 %v1001
      %1004 = vmatpush1.bf16.msra.mxu0 %v998
      %1005 = vmatprep.subr.bf16.mxu0 0
      %1006 = vmatpush1.bf16.msra.mxu0 0
      %1007 = vmatprep.subr.bf16.mxu0 0
      %1008 = vmatpush1.bf16.msra.mxu0 0
      %1009 = vmatprep.subr.bf16.mxu0 0
      %1010 = vmatpush1.bf16.msra.mxu0 0
      %1011 = vmatprep.subr.bf16.mxu0 0
      %1012 = vmatpush1.bf16.msra.mxu0 0
      %1013 = vmatprep.subr.bf16.mxu0 0
      %1014 = vmatpush1.bf16.msra.mxu0 0
      %1015 = vmatprep.subr.bf16.mxu0 0
      %1016 = vmatpush1.bf16.msra.mxu0 0
      %1017 = vmatprep.subr.bf16.mxu0 0
      %1018 = vmatpush1.bf16.msra.mxu0 0
      %1019 = vmatprep.subr.bf16.mxu0 0
      %1020 = vmatpush1.bf16.msra.mxu0 0
      %1021 = vmatprep.subr.bf16.mxu0 0
      %1022 = vmatpush1.bf16.msra.mxu0 0
      %1023 = vmatprep.subr.bf16.mxu0 0
      %1024 = vmatpush1.bf16.msra.mxu0 0
      %1025 = vmatprep.subr.bf16.mxu0 0
      %1026 = vmatpush1.bf16.msra.mxu0 0
      %1027 = vmatprep.subr.bf16.mxu0 0
      %1028 = vmatpush1.bf16.msra.mxu0 0
      %1029 = vmatprep.subr.bf16.mxu0 0
      %1030 = vmatpush1.bf16.msra.mxu0 0
      %1031 = vmatprep.subr.bf16.mxu0 0
      %1032 = vmatpush1.bf16.msra.mxu0 0
      %1033 = vmatprep.subr.bf16.mxu0 0
      %1034 = vmatpush1.bf16.msra.mxu0 0
      %1035 = vmatprep.mubr.bf16.mxu0 0
      %1036 = vmatmul.mubr.bf16.gmra.mrb[0].mxu0 %v995
      %v1037 = vpop.f32.mrb[0].mxu0
      %v1038 = vadd.f32 0.0, %v1037
      %v1039 = vpop.f32.mrb[0].mxu0
      %v1040 = vadd.f32 0.0, %v1039
      %v1041 = vpop.f32.mrb[0].mxu0
      %v1042 = vpop.f32.mrb[0].mxu0
      %1043 = vdwg.mxu0
      %v1044 = vadd.f32 %v958, %v1038
      %v1045 = vadd.f32 %v959, %v1040
      %v1046 = vpack.c.bf16 %v1044, %v1044
      %v1047 = vpack.c.bf16 %v1045, %v1045
      %v1050 = vunpack.c.l.b16 %v1046
      %v1051 = vunpack.c.l.b16 %v1047
      %v1052 = vpack.c.b16 %v1051, %v1050
      %1054 = vst [vmem:[%s204] sm:$0xff] %v1052
      %v1055 = vadd.f32 %v1044, %v1045
      %1056 = vadd.xlane.f32.xlu0 %v1055
      %v1057 = vpop.xlane.xlu0 %1056
      %v1058 = vmul.f32 %v1044, %v1044
      %v1059 = vmul.f32 %v1045, %v1045
      %v1060 = vadd.f32 %v1058, %v1059
      %1061 = vadd.xlane.f32.xlu0 %v1060
      %v1062 = vpop.xlane.xlu0 %1061
      %vm1063 = vcmask 7168
      %v1064 = vsel %vm1063, %v1057, %v1062
      %vm1065 = vcmask 15360
      %1066 = vst.msk [vmem:[%s208] sm:$0xff] %vm1065, %v1064
      %p1067 = scmp.lt.s32.totalorder %s16, 1
      %s1068 = scalar_select %p1067, %s16, 1
      %s1069 = smul.addr %s1068, 2
      %s1070 = smul.addr %s1069, 4
      %s1071 = scalar_lea.vmem %s3, %s1070
      %p1072 = scmp.lt.s32.totalorder %s16, 1
      %s1073 = scalar_select %p1072, %s16, 1
      %s1074 = smul.addr %s1073, 8
      %s1075 = scalar_lea.vmem %s4, %s1074
      // Predicated region
      $region33: #{denoise_forward.3} parent=31 // pred_check
        %p1076 = pneg %p102
      $region34: #{denoise_forward.3} parent=31 // pred_check_branch
        %1078 = sbr.rel (%p1076) target = $region36
      $region35: #{denoise_forward.3} parent=31 // pred_region
        _
      $region36: #{denoise_forward.3} parent=31 // pred_fallthru
        _
      // Predicated region
      $region37: #{denoise_forward.3} parent=31 // pred_check
        %p1079 = pneg %p128
      $region38: #{denoise_forward.3} parent=31 // pred_check_branch
        %1081 = sbr.rel (%p1079) target = $region40
      $region39: #{denoise_forward.3} parent=31 // pred_region
        _
      $region40: #{denoise_forward.3} parent=31 // pred_fallthru
        _
    $region32: #{denoise_forward.3} parent=5 // pred_fallthru
      _
    %p1082 = scmp.le.s32.totalorder 2, %s11
    // Predicated region
    $region41: #{denoise_forward.3} parent=5 // pred_check
      %p1083 = pneg %p1082
    $region42: #{denoise_forward.3} parent=5 // pred_check_branch
      %1085 = sbr.rel (%p1083) target = $region44
    $region43: #{denoise_forward.3} parent=5 // pred_region
      %s1086 = ssub.s32 %s11, 2
      // Predicated region
      $region45: #{denoise_forward.3} parent=43 // pred_check
        %p1087 = pneg %p108
      $region46: #{denoise_forward.3} parent=43 // pred_check_branch
        %1089 = sbr.rel (%p1087) target = $region48
      $region47: #{denoise_forward.3} parent=43 // pred_region
        %p1090 = scmp.lt.s32.totalorder %s17, 1
        %s1091 = scalar_select %p1090, %s17, 1
        %s1092 = smul.addr %s1091, 2
        %s1093 = smul.addr %s1092, 4
        %s1094 = scalar_lea.vmem %s3, %s1093
      $region48: #{denoise_forward.3} parent=43 // pred_fallthru
        _
      // Predicated region
      $region49: #{denoise_forward.3} parent=43 // pred_check
        %p1095 = pneg %p134
      $region50: #{denoise_forward.3} parent=43 // pred_check_branch
        %1097 = sbr.rel (%p1095) target = $region52
      $region51: #{denoise_forward.3} parent=43 // pred_region
        %p1098 = scmp.lt.s32.totalorder %s17, 1
        %s1099 = scalar_select %p1098, %s17, 1
        %s1100 = smul.addr %s1099, 8
        %s1101 = scalar_lea.vmem %s4, %s1100
      $region52: #{denoise_forward.3} parent=43 // pred_fallthru
        _
    $region44: #{denoise_forward.3} parent=5 // pred_fallthru
      _
  $region6: #{denoise_forward.3} parent=0 // loop_footer
    %s15 = sadd.s32 1, %s11
  $region7: #{denoise_forward.3} parent=0 // loop_footer_branch
    %10 = sbr.rel target = $region3
  $region8: #{denoise_forward.3} parent=0 // loop_exit
    _

</llo_original>
